<compile_context>
chip_gen: v7x
topology: tpu7x:2x2x1
jax: 0.10.0
libtpu: 0.0.40
codegen_flags: <defaults>
</compile_context>

<pallas_src>
import jax
import jax.numpy as jnp
from jax.experimental import pallas as pl
from jax.experimental.pallas import tpu as pltpu


def _round_up(x, m):
    return ((x + m - 1) // m) * m


def birvae_kernel(x_ref, eps_ref,
                  w_enc_ref, b_enc_ref,
                  w_mu_ref, b_mu_ref,
                  w_dec_ref, b_dec_ref,
                  w_rec_ref, b_rec_ref,
                  out_ref, z_ref):
    # --- Encoder fc1: one full-depth bf16 dot (att||noise pre-concatenated) ---
    h1 = jnp.dot(x_ref[...], w_enc_ref[...], preferred_element_type=jnp.float32)
    h1 = h1 + b_enc_ref[...]
    h1 = jnp.maximum(h1, 0.2 * h1)                       # LeakyReLU(0.2)

    # --- mu head (log_var head unused by BIRVAE.forward outputs) ---
    mu = jnp.dot(h1.astype(jnp.bfloat16), w_mu_ref[...],
                 preferred_element_type=jnp.float32) + b_mu_ref[...]

    # --- reparameterize: z = mu + eps (f32) ---
    z = mu + eps_ref[...]
    z_ref[...] = z.astype(z_ref.dtype)

    # --- Decoder ---
    h2 = jnp.dot(z.astype(jnp.bfloat16), w_dec_ref[...],
                 preferred_element_type=jnp.float32) + b_dec_ref[...]
    h2 = jnp.maximum(h2, 0.2 * h2)                       # LeakyReLU(0.2)
    out = jnp.dot(h2.astype(jnp.bfloat16), w_rec_ref[...],
                  preferred_element_type=jnp.float32) + b_rec_ref[...]
    out_ref[...] = jnp.maximum(out, 0.0).astype(out_ref.dtype)   # ReLU


def prepare_params(params):
    """One-time preprocessing: pad every feature dim to a multiple of 128
    (lane-dense vregs, unmasked stores) and cast weights to bf16. Zero padding
    keeps the math exact. Do this once at init, not per forward call."""
    (w_enc, b_enc, w_mu, b_mu, w_dec, b_dec, w_rec, b_rec) = params
    in_total, ngh = w_enc.shape
    nz = w_mu.shape[1]
    ndh = w_dec.shape[1]
    res = w_rec.shape[1]

    K_P = _round_up(in_total, 128)
    NGH_P = _round_up(ngh, 128)
    NZ_P = _round_up(nz, 128)
    NDH_P = _round_up(ndh, 128)
    RES_P = _round_up(res, 128)

    def padw(w, r, c):
        w = w.astype(jnp.float32)
        return jnp.pad(w, ((0, r - w.shape[0]), (0, c - w.shape[1]))).astype(jnp.bfloat16)

    def padb(b, c):
        b = b.astype(jnp.float32).reshape(1, -1)
        return jnp.pad(b, ((0, 0), (0, c - b.shape[1])))

    return dict(
        w_enc=padw(w_enc, K_P, NGH_P), b_enc=padb(b_enc, NGH_P),
        w_mu=padw(w_mu, NGH_P, NZ_P), b_mu=padb(b_mu, NZ_P),
        w_dec=padw(w_dec, NZ_P, NDH_P), b_dec=padb(b_dec, NDH_P),
        w_rec=padw(w_rec, NDH_P, RES_P), b_rec=padb(b_rec, RES_P),
        dims=dict(in_total=in_total, nz=nz, ngh=ngh, ndh=ndh, res=res,
                  K_P=K_P, NGH_P=NGH_P, NZ_P=NZ_P, NDH_P=NDH_P, RES_P=RES_P),
    )


def _vmem_limit_bytes(tm, dims, single_buffer_weights):
    K_P, NGH_P = dims["K_P"], dims["NGH_P"]
    NZ_P, NDH_P, RES_P = dims["NZ_P"], dims["NDH_P"], dims["RES_P"]
    wbytes = 2 * (K_P * NGH_P + NGH_P * NZ_P + NZ_P * NDH_P + NDH_P * RES_P)  # bf16
    bbytes = 4 * (NGH_P + NZ_P + NDH_P + RES_P)                               # f32
    wbufs = 1 if single_buffer_weights else 2
    act_in = tm * (2 * K_P + 4 * NZ_P)            # x (bf16) + eps (f32)
    act_out = tm * 4 * (RES_P + NZ_P)             # out + z (f32)
    interm = tm * 4 * (NGH_P + NDH_P + NZ_P)      # h1/h2/mu temporaries
    total = wbufs * (wbytes + bbytes) + 2 * (act_in + act_out) + interm
    total = int(total * 1.3) + (2 << 20)          # headroom
    return max(32 << 20, min(total, 128 << 20))


def birvae_forward(att, noise, eps, prepped, *, tm=None, single_buffer_weights=True):
    """Returns (out, z) matching BIRVAE.forward. `prepped` = prepare_params(params)."""
    d = prepped["dims"]
    B, att_size = att.shape
    nz = noise.shape[1]
    assert att_size + nz == d["in_total"] and nz == d["nz"]
    K_P, NZ_P, RES_P = d["K_P"], d["NZ_P"], d["RES_P"]

    # Batch tile: single step for small B (16-row bf16 min tile), 256/512 for
    # large B so >=2 grid steps keep both v7x TensorCores fed.
    if tm is None:
        if B <= 256:
            tm = _round_up(B, 16)
        elif B <= 1024:
            tm = 256
        else:
            tm = 512
    B_P = _round_up(B, tm)

    # Wrapper-side concat + pad of activations (cheap XLA ops); bf16 input
    # halves activation DMA and feeds one full-depth MXU pass in the kernel.
    x = jnp.concatenate([att.astype(jnp.float32), noise.astype(jnp.float32)], axis=1)
    x = jnp.pad(x, ((0, B_P - B), (0, K_P - x.shape[1]))).astype(jnp.bfloat16)
    eps_p = jnp.pad(eps.astype(jnp.float32), ((0, B_P - B), (0, NZ_P - nz)))

    grid = (B_P // tm,)
    row_spec = lambda cols: pl.BlockSpec((tm, cols), lambda i: (i, 0))
    if single_buffer_weights:
        # Constant block index -> single-buffered residency (half the VMEM).
        wspec = lambda shape: pl.BlockSpec(shape, lambda i: (0, 0),
                                           pipeline_mode=pl.Buffered(1))
    else:
        wspec = lambda shape: pl.BlockSpec(shape, lambda i: (0, 0))

    weights = (prepped["w_enc"], prepped["b_enc"], prepped["w_mu"], prepped["b_mu"],
               prepped["w_dec"], prepped["b_dec"], prepped["w_rec"], prepped["b_rec"])

    out_p, z_p = pl.pallas_call(
        birvae_kernel,
        out_shape=(jax.ShapeDtypeStruct((B_P, RES_P), jnp.float32),
                   jax.ShapeDtypeStruct((B_P, NZ_P), jnp.float32)),
        grid=grid,
        in_specs=[row_spec(K_P),            # x = att||noise  (batch-tiled, bf16)
                  row_spec(NZ_P)]           # eps             (batch-tiled, f32)
                 + [wspec(w.shape) for w in weights],   # weights/biases: VMEM-resident
        out_specs=(row_spec(RES_P), row_spec(NZ_P)),
        compiler_params=pltpu.CompilerParams(
            dimension_semantics=("parallel",),
            vmem_limit_bytes=_vmem_limit_bytes(tm, d, single_buffer_weights)),
    )(x, eps_p, *weights)

    return out_p[:B, :d["res"]], z_p[:B, :nz]


def init_params(key, att_size, nz, ngh, ndh, res_size):
    """weights_init: Linear weights ~ N(0, 0.02), biases = 0."""
    ks = jax.random.split(key, 4)
    normal = lambda k, shape: 0.02 * jax.random.normal(k, shape, dtype=jnp.float32)
    w_enc = normal(ks[0], (att_size + nz, ngh))
    b_enc = jnp.zeros((ngh,), jnp.float32)
    w_mu = normal(ks[1], (ngh, nz))
    b_mu = jnp.zeros((nz,), jnp.float32)
    w_dec = normal(ks[2], (nz, ndh))
    b_dec = jnp.zeros((ndh,), jnp.float32)
    w_rec = normal(ks[3], (ndh, res_size))
    b_rec = jnp.zeros((res_size,), jnp.float32)
    return (w_enc, b_enc, w_mu, b_mu, w_dec, b_dec, w_rec, b_rec)


if __name__ == "__main__":
    # Small shapes consistent with the module:
    # opt.attSize=16, opt.nz=16, opt.ngh=32, opt.ndh=32, opt.resSize=64, z_dim=nz
    B, ATT, NZ, NGH, NDH, RES = 8, 16, 16, 32, 32, 64
    I = 13.3
    set_var = 1.0 / 4.0 ** (I / NZ)   # passed as numpy `scale` (std) in the reference

    key = jax.random.PRNGKey(0)
    k_att, k_noise, k_eps, k_params = jax.random.split(key, 4)

    att = jax.random.normal(k_att, (B, ATT), dtype=jnp.float32)
    noise = jax.random.normal(k_noise, (B, NZ), dtype=jnp.float32)
    eps = set_var * jax.random.normal(k_eps, (B, NZ), dtype=jnp.float32)
    params = init_params(k_params, ATT, NZ, NGH, NDH, RES)

    prepped = prepare_params(params)   # one-time weight pad/cast, reused per call

    try:
        out, z = birvae_forward(att, noise, eps, prepped, single_buffer_weights=True)
        jax.block_until_ready((out, z))
    except Exception:
        # Fallback if this jax build rejects pipeline_mode=pl.Buffered(1).
        out, z = birvae_forward(att, noise, eps, prepped, single_buffer_weights=False)
        jax.block_until_ready((out, z))

    # Reference in plain JAX f32 (same math as BIRVAE.forward).
    (w_enc, b_enc, w_mu, b_mu, w_dec, b_dec, w_rec, b_rec) = params
    h = jnp.concatenate([att, noise], axis=1)
    h1 = h @ w_enc + b_enc
    h1 = jnp.where(h1 > 0, h1, 0.2 * h1)
    mu = h1 @ w_mu + b_mu
    z_ref = mu + eps
    h2 = z_ref @ w_dec + b_dec
    h2 = jnp.where(h2 > 0, h2, 0.2 * h2)
    out_ref = jnp.maximum(h2 @ w_rec + b_rec, 0.0)

    # bf16 weights / dot operands -> looser tolerance than the pure-f32 version.
    assert jnp.allclose(z, z_ref, atol=2e-2, rtol=2e-2)
    assert jnp.allclose(out, out_ref, atol=2e-2, rtol=2e-2)

    print("KERNEL_OK")
</pallas_src>

<mosaic_0001>
module attributes {stable_mosaic.version = 11 : i64} {
  func.func @birvae_kernel(%arg0: i32, %arg1: memref<16x128xbf16, #tpu.memory_space<vmem>>, %arg2: memref<16x128xf32, #tpu.memory_space<vmem>>, %arg3: memref<128x128xbf16, #tpu.memory_space<vmem>>, %arg4: memref<1x128xf32, #tpu.memory_space<vmem>>, %arg5: memref<128x128xbf16, #tpu.memory_space<vmem>>, %arg6: memref<1x128xf32, #tpu.memory_space<vmem>>, %arg7: memref<128x128xbf16, #tpu.memory_space<vmem>>, %arg8: memref<1x128xf32, #tpu.memory_space<vmem>>, %arg9: memref<128x128xbf16, #tpu.memory_space<vmem>>, %arg10: memref<1x128xf32, #tpu.memory_space<vmem>>, %arg11: memref<16x128xf32, #tpu.memory_space<vmem>>, %arg12: memref<16x128xf32, #tpu.memory_space<vmem>>) attributes {dimension_semantics = [#tpu.dimension_semantics<parallel>], iteration_bounds = array<i64: 1>, scalar_prefetch = 0 : i64, scratch_operands = 0 : i64, tpu.core_type = #tpu.core_type<tc>, window_params = [{transform_indices = @transform_0, window_bounds = array<i64: 16, 128>}, {transform_indices = @transform_1, window_bounds = array<i64: 16, 128>}, {pipeline_mode = #tpu.pipeline_mode<synchronous>, transform_indices = @transform_2, window_bounds = array<i64: 128, 128>}, {pipeline_mode = #tpu.pipeline_mode<synchronous>, transform_indices = @transform_3, window_bounds = array<i64: 1, 128>}, {pipeline_mode = #tpu.pipeline_mode<synchronous>, transform_indices = @transform_4, window_bounds = array<i64: 128, 128>}, {pipeline_mode = #tpu.pipeline_mode<synchronous>, transform_indices = @transform_5, window_bounds = array<i64: 1, 128>}, {pipeline_mode = #tpu.pipeline_mode<synchronous>, transform_indices = @transform_6, window_bounds = array<i64: 128, 128>}, {pipeline_mode = #tpu.pipeline_mode<synchronous>, transform_indices = @transform_7, window_bounds = array<i64: 1, 128>}, {pipeline_mode = #tpu.pipeline_mode<synchronous>, transform_indices = @transform_8, window_bounds = array<i64: 128, 128>}, {pipeline_mode = #tpu.pipeline_mode<synchronous>, transform_indices = @transform_9, window_bounds = array<i64: 1, 128>}, {transform_indices = @transform_10, window_bounds = array<i64: 16, 128>}, {transform_indices = @transform_11, window_bounds = array<i64: 16, 128>}]} {
    %c0 = arith.constant 0 : index
    %c0_0 = arith.constant 0 : index
    %0 = vector.load %arg1[%c0, %c0_0] : memref<16x128xbf16, #tpu.memory_space<vmem>>, vector<16x128xbf16>
    %c0_1 = arith.constant 0 : index
    %c0_2 = arith.constant 0 : index
    %1 = vector.load %arg3[%c0_1, %c0_2] : memref<128x128xbf16, #tpu.memory_space<vmem>>, vector<128x128xbf16>
    %cst = arith.constant dense<0.000000e+00> : vector<16x128xf32>
    %2 = tpu.matmul %0, %1, %cst {dimension_numbers = #tpu.dot_dimension_numbers<[1], [0], [0], [1], [0, 0, 1, 1], [], []>} : vector<16x128xbf16>, vector<128x128xbf16>, vector<16x128xf32> -> vector<16x128xf32>
    %c0_3 = arith.constant 0 : index
    %c0_4 = arith.constant 0 : index
    %3 = vector.load %arg4[%c0_3, %c0_4] : memref<1x128xf32, #tpu.memory_space<vmem>>, vector<1x128xf32>
    %4 = vector.broadcast %3 : vector<1x128xf32> to vector<16x128xf32>
    %5 = arith.addf %2, %4 : vector<16x128xf32>
    %cst_5 = arith.constant 2.000000e-01 : f32
    %6 = vector.broadcast %cst_5 : f32 to vector<16x128xf32>
    %7 = arith.mulf %6, %5 : vector<16x128xf32>
    %8 = arith.maximumf %5, %7 : vector<16x128xf32>
    %9 = arith.truncf %8 : vector<16x128xf32> to vector<16x128xbf16>
    %c0_6 = arith.constant 0 : index
    %c0_7 = arith.constant 0 : index
    %10 = vector.load %arg5[%c0_6, %c0_7] : memref<128x128xbf16, #tpu.memory_space<vmem>>, vector<128x128xbf16>
    %cst_8 = arith.constant dense<0.000000e+00> : vector<16x128xf32>
    %11 = tpu.matmul %9, %10, %cst_8 {dimension_numbers = #tpu.dot_dimension_numbers<[1], [0], [0], [1], [0, 0, 1, 1], [], []>} : vector<16x128xbf16>, vector<128x128xbf16>, vector<16x128xf32> -> vector<16x128xf32>
    %c0_9 = arith.constant 0 : index
    %c0_10 = arith.constant 0 : index
    %12 = vector.load %arg6[%c0_9, %c0_10] : memref<1x128xf32, #tpu.memory_space<vmem>>, vector<1x128xf32>
    %13 = vector.broadcast %12 : vector<1x128xf32> to vector<16x128xf32>
    %14 = arith.addf %11, %13 : vector<16x128xf32>
    %c0_11 = arith.constant 0 : index
    %c0_12 = arith.constant 0 : index
    %15 = vector.load %arg2[%c0_11, %c0_12] : memref<16x128xf32, #tpu.memory_space<vmem>>, vector<16x128xf32>
    %16 = arith.addf %14, %15 : vector<16x128xf32>
    %c0_13 = arith.constant 0 : index
    %c0_14 = arith.constant 0 : index
    %17 = vector.load %arg12[%c0_13, %c0_14] : memref<16x128xf32, #tpu.memory_space<vmem>>, vector<16x128xf32>
    tpu.vector_store %arg12[%c0_13, %c0_14], %16 {strides = array<i32>} : memref<16x128xf32, #tpu.memory_space<vmem>>, vector<16x128xf32>,
    %18 = arith.truncf %16 : vector<16x128xf32> to vector<16x128xbf16>
    %c0_15 = arith.constant 0 : index
    %c0_16 = arith.constant 0 : index
    %19 = vector.load %arg7[%c0_15, %c0_16] : memref<128x128xbf16, #tpu.memory_space<vmem>>, vector<128x128xbf16>
    %cst_17 = arith.constant dense<0.000000e+00> : vector<16x128xf32>
    %20 = tpu.matmul %18, %19, %cst_17 {dimension_numbers = #tpu.dot_dimension_numbers<[1], [0], [0], [1], [0, 0, 1, 1], [], []>} : vector<16x128xbf16>, vector<128x128xbf16>, vector<16x128xf32> -> vector<16x128xf32>
    %c0_18 = arith.constant 0 : index
    %c0_19 = arith.constant 0 : index
    %21 = vector.load %arg8[%c0_18, %c0_19] : memref<1x128xf32, #tpu.memory_space<vmem>>, vector<1x128xf32>
    %22 = vector.broadcast %21 : vector<1x128xf32> to vector<16x128xf32>
    %23 = arith.addf %20, %22 : vector<16x128xf32>
    %cst_20 = arith.constant 2.000000e-01 : f32
    %24 = vector.broadcast %cst_20 : f32 to vector<16x128xf32>
    %25 = arith.mulf %24, %23 : vector<16x128xf32>
    %26 = arith.maximumf %23, %25 : vector<16x128xf32>
    %27 = arith.truncf %26 : vector<16x128xf32> to vector<16x128xbf16>
    %c0_21 = arith.constant 0 : index
    %c0_22 = arith.constant 0 : index
    %28 = vector.load %arg9[%c0_21, %c0_22] : memref<128x128xbf16, #tpu.memory_space<vmem>>, vector<128x128xbf16>
    %cst_23 = arith.constant dense<0.000000e+00> : vector<16x128xf32>
    %29 = tpu.matmul %27, %28, %cst_23 {dimension_numbers = #tpu.dot_dimension_numbers<[1], [0], [0], [1], [0, 0, 1, 1], [], []>} : vector<16x128xbf16>, vector<128x128xbf16>, vector<16x128xf32> -> vector<16x128xf32>
    %c0_24 = arith.constant 0 : index
    %c0_25 = arith.constant 0 : index
    %30 = vector.load %arg10[%c0_24, %c0_25] : memref<1x128xf32, #tpu.memory_space<vmem>>, vector<1x128xf32>
    %31 = vector.broadcast %30 : vector<1x128xf32> to vector<16x128xf32>
    %32 = arith.addf %29, %31 : vector<16x128xf32>
    %cst_26 = arith.constant 0.000000e+00 : f32
    %33 = vector.broadcast %cst_26 : f32 to vector<16x128xf32>
    %34 = arith.maximumf %32, %33 : vector<16x128xf32>
    %c0_27 = arith.constant 0 : index
    %c0_28 = arith.constant 0 : index
    %35 = vector.load %arg11[%c0_27, %c0_28] : memref<16x128xf32, #tpu.memory_space<vmem>>, vector<16x128xf32>
    tpu.vector_store %arg11[%c0_27, %c0_28], %34 {strides = array<i32>} : memref<16x128xf32, #tpu.memory_space<vmem>>, vector<16x128xf32>,
    return
  }
  func.func @transform_0(%arg0: i32) -> (i32, i32) {
    %c0_i32 = arith.constant 0 : i32
    %c0_i32_0 = arith.constant 0 : i32
    return %arg0, %c0_i32 : i32, i32
  }
  func.func @transform_1(%arg0: i32) -> (i32, i32) {
    %c0_i32 = arith.constant 0 : i32
    %c0_i32_0 = arith.constant 0 : i32
    return %arg0, %c0_i32 : i32, i32
  }
  func.func @transform_2(%arg0: i32) -> (i32, i32) {
    %c0_i32 = arith.constant 0 : i32
    %c0_i32_0 = arith.constant 0 : i32
    %c0_i32_1 = arith.constant 0 : i32
    return %c0_i32, %c0_i32_0 : i32, i32
  }
  func.func @transform_3(%arg0: i32) -> (i32, i32) {
    %c0_i32 = arith.constant 0 : i32
    %c0_i32_0 = arith.constant 0 : i32
    %c0_i32_1 = arith.constant 0 : i32
    return %c0_i32, %c0_i32_0 : i32, i32
  }
  func.func @transform_4(%arg0: i32) -> (i32, i32) {
    %c0_i32 = arith.constant 0 : i32
    %c0_i32_0 = arith.constant 0 : i32
    %c0_i32_1 = arith.constant 0 : i32
    return %c0_i32, %c0_i32_0 : i32, i32
  }
  func.func @transform_5(%arg0: i32) -> (i32, i32) {
    %c0_i32 = arith.constant 0 : i32
    %c0_i32_0 = arith.constant 0 : i32
    %c0_i32_1 = arith.constant 0 : i32
    return %c0_i32, %c0_i32_0 : i32, i32
  }
  func.func @transform_6(%arg0: i32) -> (i32, i32) {
    %c0_i32 = arith.constant 0 : i32
    %c0_i32_0 = arith.constant 0 : i32
    %c0_i32_1 = arith.constant 0 : i32
    return %c0_i32, %c0_i32_0 : i32, i32
  }
  func.func @transform_7(%arg0: i32) -> (i32, i32) {
    %c0_i32 = arith.constant 0 : i32
    %c0_i32_0 = arith.constant 0 : i32
    %c0_i32_1 = arith.constant 0 : i32
    return %c0_i32, %c0_i32_0 : i32, i32
  }
  func.func @transform_8(%arg0: i32) -> (i32, i32) {
    %c0_i32 = arith.constant 0 : i32
    %c0_i32_0 = arith.constant 0 : i32
    %c0_i32_1 = arith.constant 0 : i32
    return %c0_i32, %c0_i32_0 : i32, i32
  }
  func.func @transform_9(%arg0: i32) -> (i32, i32) {
    %c0_i32 = arith.constant 0 : i32
    %c0_i32_0 = arith.constant 0 : i32
    %c0_i32_1 = arith.constant 0 : i32
    return %c0_i32, %c0_i32_0 : i32, i32
  }
  func.func @transform_10(%arg0: i32) -> (i32, i32) {
    %c0_i32 = arith.constant 0 : i32
    %c0_i32_0 = arith.constant 0 : i32
    return %arg0, %c0_i32 : i32, i32
  }
  func.func @transform_11(%arg0: i32) -> (i32, i32) {
    %c0_i32 = arith.constant 0 : i32
    %c0_i32_0 = arith.constant 0 : i32
    return %arg0, %c0_i32 : i32, i32
  }
}

module attributes {stable_mosaic.version = 11 : i64} {
  func.func @birvae_kernel(%arg0: i32, %arg1: memref<16x128xbf16, #tpu.memory_space<vmem>>, %arg2: memref<16x128xf32, #tpu.memory_space<vmem>>, %arg3: memref<128x128xbf16, #tpu.memory_space<vmem>>, %arg4: memref<1x128xf32, #tpu.memory_space<vmem>>, %arg5: memref<128x128xbf16, #tpu.memory_space<vmem>>, %arg6: memref<1x128xf32, #tpu.memory_space<vmem>>, %arg7: memref<128x128xbf16, #tpu.memory_space<vmem>>, %arg8: memref<1x128xf32, #tpu.memory_space<vmem>>, %arg9: memref<128x128xbf16, #tpu.memory_space<vmem>>, %arg10: memref<1x128xf32, #tpu.memory_space<vmem>>, %arg11: memref<16x128xf32, #tpu.memory_space<vmem>>, %arg12: memref<16x128xf32, #tpu.memory_space<vmem>>) attributes {dimension_semantics = [#tpu.dimension_semantics<parallel>], iteration_bounds = array<i64: 1>, scalar_prefetch = 0 : i64, scratch_operands = 0 : i64, tpu.core_type = #tpu.core_type<tc>, window_params = [{transform_indices = @transform_0, window_bounds = array<i64: 16, 128>}, {transform_indices = @transform_1, window_bounds = array<i64: 16, 128>}, {pipeline_mode = #tpu.pipeline_mode<synchronous>, transform_indices = @transform_2, window_bounds = array<i64: 128, 128>}, {pipeline_mode = #tpu.pipeline_mode<synchronous>, transform_indices = @transform_3, window_bounds = array<i64: 1, 128>}, {pipeline_mode = #tpu.pipeline_mode<synchronous>, transform_indices = @transform_4, window_bounds = array<i64: 128, 128>}, {pipeline_mode = #tpu.pipeline_mode<synchronous>, transform_indices = @transform_5, window_bounds = array<i64: 1, 128>}, {pipeline_mode = #tpu.pipeline_mode<synchronous>, transform_indices = @transform_6, window_bounds = array<i64: 128, 128>}, {pipeline_mode = #tpu.pipeline_mode<synchronous>, transform_indices = @transform_7, window_bounds = array<i64: 1, 128>}, {pipeline_mode = #tpu.pipeline_mode<synchronous>, transform_indices = @transform_8, window_bounds = array<i64: 128, 128>}, {pipeline_mode = #tpu.pipeline_mode<synchronous>, transform_indices = @transform_9, window_bounds = array<i64: 1, 128>}, {transform_indices = @transform_10, window_bounds = array<i64: 16, 128>}, {transform_indices = @transform_11, window_bounds = array<i64: 16, 128>}]} {
    %c0 = arith.constant 0 : index
    %c0_0 = arith.constant 0 : index
    %0 = vector.load %arg1[%c0, %c0_0] : memref<16x128xbf16, #tpu.memory_space<vmem>>, vector<16x128xbf16>
    %c0_1 = arith.constant 0 : index
    %c0_2 = arith.constant 0 : index
    %1 = vector.load %arg3[%c0_1, %c0_2] : memref<128x128xbf16, #tpu.memory_space<vmem>>, vector<128x128xbf16>
    %cst = arith.constant dense<0.000000e+00> : vector<16x128xf32>
    %2 = tpu.matmul %0, %1, %cst {dimension_numbers = #tpu.dot_dimension_numbers<[1], [0], [0], [1], [0, 0, 1, 1], [], []>} : vector<16x128xbf16>, vector<128x128xbf16>, vector<16x128xf32> -> vector<16x128xf32>
    %c0_3 = arith.constant 0 : index
    %c0_4 = arith.constant 0 : index
    %3 = vector.load %arg4[%c0_3, %c0_4] : memref<1x128xf32, #tpu.memory_space<vmem>>, vector<1x128xf32>
    %4 = vector.broadcast %3 : vector<1x128xf32> to vector<16x128xf32>
    %5 = arith.addf %2, %4 : vector<16x128xf32>
    %cst_5 = arith.constant 2.000000e-01 : f32
    %6 = vector.broadcast %cst_5 : f32 to vector<16x128xf32>
    %7 = arith.mulf %6, %5 : vector<16x128xf32>
    %8 = arith.maximumf %5, %7 : vector<16x128xf32>
    %9 = arith.truncf %8 : vector<16x128xf32> to vector<16x128xbf16>
    %c0_6 = arith.constant 0 : index
    %c0_7 = arith.constant 0 : index
    %10 = vector.load %arg5[%c0_6, %c0_7] : memref<128x128xbf16, #tpu.memory_space<vmem>>, vector<128x128xbf16>
    %cst_8 = arith.constant dense<0.000000e+00> : vector<16x128xf32>
    %11 = tpu.matmul %9, %10, %cst_8 {dimension_numbers = #tpu.dot_dimension_numbers<[1], [0], [0], [1], [0, 0, 1, 1], [], []>} : vector<16x128xbf16>, vector<128x128xbf16>, vector<16x128xf32> -> vector<16x128xf32>
    %c0_9 = arith.constant 0 : index
    %c0_10 = arith.constant 0 : index
    %12 = vector.load %arg6[%c0_9, %c0_10] : memref<1x128xf32, #tpu.memory_space<vmem>>, vector<1x128xf32>
    %13 = vector.broadcast %12 : vector<1x128xf32> to vector<16x128xf32>
    %14 = arith.addf %11, %13 : vector<16x128xf32>
    %c0_11 = arith.constant 0 : index
    %c0_12 = arith.constant 0 : index
    %15 = vector.load %arg2[%c0_11, %c0_12] : memref<16x128xf32, #tpu.memory_space<vmem>>, vector<16x128xf32>
    %16 = arith.addf %14, %15 : vector<16x128xf32>
    %c0_13 = arith.constant 0 : index
    %c0_14 = arith.constant 0 : index
    %17 = vector.load %arg12[%c0_13, %c0_14] : memref<16x128xf32, #tpu.memory_space<vmem>>, vector<16x128xf32>
    tpu.vector_store %arg12[%c0_13, %c0_14], %16 {strides = array<i32>} : memref<16x128xf32, #tpu.memory_space<vmem>>, vector<16x128xf32>,
    %18 = arith.truncf %16 : vector<16x128xf32> to vector<16x128xbf16>
    %c0_15 = arith.constant 0 : index
    %c0_16 = arith.constant 0 : index
    %19 = vector.load %arg7[%c0_15, %c0_16] : memref<128x128xbf16, #tpu.memory_space<vmem>>, vector<128x128xbf16>
    %cst_17 = arith.constant dense<0.000000e+00> : vector<16x128xf32>
    %20 = tpu.matmul %18, %19, %cst_17 {dimension_numbers = #tpu.dot_dimension_numbers<[1], [0], [0], [1], [0, 0, 1, 1], [], []>} : vector<16x128xbf16>, vector<128x128xbf16>, vector<16x128xf32> -> vector<16x128xf32>
    %c0_18 = arith.constant 0 : index
    %c0_19 = arith.constant 0 : index
    %21 = vector.load %arg8[%c0_18, %c0_19] : memref<1x128xf32, #tpu.memory_space<vmem>>, vector<1x128xf32>
    %22 = vector.broadcast %21 : vector<1x128xf32> to vector<16x128xf32>
    %23 = arith.addf %20, %22 : vector<16x128xf32>
    %cst_20 = arith.constant 2.000000e-01 : f32
    %24 = vector.broadcast %cst_20 : f32 to vector<16x128xf32>
    %25 = arith.mulf %24, %23 : vector<16x128xf32>
    %26 = arith.maximumf %23, %25 : vector<16x128xf32>
    %27 = arith.truncf %26 : vector<16x128xf32> to vector<16x128xbf16>
    %c0_21 = arith.constant 0 : index
    %c0_22 = arith.constant 0 : index
    %28 = vector.load %arg9[%c0_21, %c0_22] : memref<128x128xbf16, #tpu.memory_space<vmem>>, vector<128x128xbf16>
    %cst_23 = arith.constant dense<0.000000e+00> : vector<16x128xf32>
    %29 = tpu.matmul %27, %28, %cst_23 {dimension_numbers = #tpu.dot_dimension_numbers<[1], [0], [0], [1], [0, 0, 1, 1], [], []>} : vector<16x128xbf16>, vector<128x128xbf16>, vector<16x128xf32> -> vector<16x128xf32>
    %c0_24 = arith.constant 0 : index
    %c0_25 = arith.constant 0 : index
    %30 = vector.load %arg10[%c0_24, %c0_25] : memref<1x128xf32, #tpu.memory_space<vmem>>, vector<1x128xf32>
    %31 = vector.broadcast %30 : vector<1x128xf32> to vector<16x128xf32>
    %32 = arith.addf %29, %31 : vector<16x128xf32>
    %cst_26 = arith.constant 0.000000e+00 : f32
    %33 = vector.broadcast %cst_26 : f32 to vector<16x128xf32>
    %34 = arith.maximumf %32, %33 : vector<16x128xf32>
    %c0_27 = arith.constant 0 : index
    %c0_28 = arith.constant 0 : index
    %35 = vector.load %arg11[%c0_27, %c0_28] : memref<16x128xf32, #tpu.memory_space<vmem>>, vector<16x128xf32>
    tpu.vector_store %arg11[%c0_27, %c0_28], %34 {strides = array<i32>} : memref<16x128xf32, #tpu.memory_space<vmem>>, vector<16x128xf32>,
    return
  }
  func.func @transform_0(%arg0: i32) -> (i32, i32) {
    %c0_i32 = arith.constant 0 : i32
    %c0_i32_0 = arith.constant 0 : i32
    return %arg0, %c0_i32 : i32, i32
  }
  func.func @transform_1(%arg0: i32) -> (i32, i32) {
    %c0_i32 = arith.constant 0 : i32
    %c0_i32_0 = arith.constant 0 : i32
    return %arg0, %c0_i32 : i32, i32
  }
  func.func @transform_2(%arg0: i32) -> (i32, i32) {
    %c0_i32 = arith.constant 0 : i32
    %c0_i32_0 = arith.constant 0 : i32
    %c0_i32_1 = arith.constant 0 : i32
    return %c0_i32, %c0_i32_0 : i32, i32
  }
  func.func @transform_3(%arg0: i32) -> (i32, i32) {
    %c0_i32 = arith.constant 0 : i32
    %c0_i32_0 = arith.constant 0 : i32
    %c0_i32_1 = arith.constant 0 : i32
    return %c0_i32, %c0_i32_0 : i32, i32
  }
  func.func @transform_4(%arg0: i32) -> (i32, i32) {
    %c0_i32 = arith.constant 0 : i32
    %c0_i32_0 = arith.constant 0 : i32
    %c0_i32_1 = arith.constant 0 : i32
    return %c0_i32, %c0_i32_0 : i32, i32
  }
  func.func @transform_5(%arg0: i32) -> (i32, i32) {
    %c0_i32 = arith.constant 0 : i32
    %c0_i32_0 = arith.constant 0 : i32
    %c0_i32_1 = arith.constant 0 : i32
    return %c0_i32, %c0_i32_0 : i32, i32
  }
  func.func @transform_6(%arg0: i32) -> (i32, i32) {
    %c0_i32 = arith.constant 0 : i32
    %c0_i32_0 = arith.constant 0 : i32
    %c0_i32_1 = arith.constant 0 : i32
    return %c0_i32, %c0_i32_0 : i32, i32
  }
  func.func @transform_7(%arg0: i32) -> (i32, i32) {
    %c0_i32 = arith.constant 0 : i32
    %c0_i32_0 = arith.constant 0 : i32
    %c0_i32_1 = arith.constant 0 : i32
    return %c0_i32, %c0_i32_0 : i32, i32
  }
  func.func @transform_8(%arg0: i32) -> (i32, i32) {
    %c0_i32 = arith.constant 0 : i32
    %c0_i32_0 = arith.constant 0 : i32
    %c0_i32_1 = arith.constant 0 : i32
    return %c0_i32, %c0_i32_0 : i32, i32
  }
  func.func @transform_9(%arg0: i32) -> (i32, i32) {
    %c0_i32 = arith.constant 0 : i32
    %c0_i32_0 = arith.constant 0 : i32
    %c0_i32_1 = arith.constant 0 : i32
    return %c0_i32, %c0_i32_0 : i32, i32
  }
  func.func @transform_10(%arg0: i32) -> (i32, i32) {
    %c0_i32 = arith.constant 0 : i32
    %c0_i32_0 = arith.constant 0 : i32
    return %arg0, %c0_i32 : i32, i32
  }
  func.func @transform_11(%arg0: i32) -> (i32, i32) {
    %c0_i32 = arith.constant 0 : i32
    %c0_i32_0 = arith.constant 0 : i32
    return %arg0, %c0_i32 : i32, i32
  }
}

</mosaic_0001>

<llo_original>
// kernel: tpu_custom_call.1
$region0: #{tpu_custom_call.1}
  #allocation0 [shape = 'u32[]', space=smem, size = 0x4, offset = 0x4, fixed_abs, tag = 'smem constant byte address 0x4 - core index']
  #allocation1 [shape = 'u32[144,128]{1,0:T(1,128)}', space=vmem, size = 0x12000, scoped, tag = 'internal scratch']
  %s0 = inlined_call_operand.hbm [shape: bf16[16,128], index: 0, kind: input, shape index: {}]
  %s1 = inlined_call_operand.hbm [shape: f32[16,128], index: 1, kind: input, shape index: {}]
  %s2 = inlined_call_operand.hbm [shape: bf16[128,128], index: 2, kind: input, shape index: {}]
  %s3 = inlined_call_operand.vmem [shape: f32[1,128], index: 3, kind: input, shape index: {}]
  %s4 = inlined_call_operand.hbm [shape: bf16[128,128], index: 4, kind: input, shape index: {}]
  %s5 = inlined_call_operand.vmem [shape: f32[1,128], index: 5, kind: input, shape index: {}]
  %s6 = inlined_call_operand.hbm [shape: bf16[128,128], index: 6, kind: input, shape index: {}]
  %s7 = inlined_call_operand.vmem [shape: f32[1,128], index: 7, kind: input, shape index: {}]
  %s8 = inlined_call_operand.hbm [shape: bf16[128,128], index: 8, kind: input, shape index: {}]
  %s9 = inlined_call_operand.vmem [shape: f32[1,128], index: 9, kind: input, shape index: {}]
  %s10 = inlined_call_operand.hbm [shape: f32[16,128], index: 10, kind: output, shape index: {0}]
  %s11 = inlined_call_operand.hbm [shape: f32[16,128], index: 11, kind: output, shape index: {1}]
  %12 = xla_tuple %s10, %s11
  %s13 = sld [smem:[#allocation0]]
  $region82: #{tpu_custom_call.1} parent=0
    _
  %s15 = ssub.s32 1, %s13
  %s16 = scalar_select 0, %s15, %s13
  $region1: #{tpu_custom_call.1} parent=0
    #allocation2 [shape = 'u8[4096]{0}', space=vmem, size = 0x1000, scoped, tag = 'input window, operand 0, single buffered']
    #allocation3 [shape = 's32[1]{0}', space=sflag, size = 0x4, scoped, tag = 'scoped memory for tpu_custom_call.1']
    #allocation4 [shape = 's32[1]{0}', space=sflag, size = 0x4, scoped, tag = 'scoped memory for tpu_custom_call.1']
    #allocation5 [shape = 'u8[8192]{0}', space=vmem, size = 0x2000, scoped, tag = 'input window, operand 1, single buffered']
    #allocation6 [shape = 's32[1]{0}', space=sflag, size = 0x4, scoped, tag = 'scoped memory for tpu_custom_call.1']
    #allocation7 [shape = 'u8[32768]{0}', space=vmem, size = 0x8000, scoped, tag = 'input window, operand 2, single buffered']
    #allocation8 [shape = 'u8[32768]{0}', space=vmem, size = 0x8000, scoped, tag = 'input window, operand 4, single buffered']
    #allocation9 [shape = 's32[1]{0}', space=sflag, size = 0x4, scoped, tag = 'scoped memory for tpu_custom_call.1']
    #allocation10 [shape = 'u8[32768]{0}', space=vmem, size = 0x8000, scoped, tag = 'input window, operand 6, single buffered']
    #allocation11 [shape = 'u8[32768]{0}', space=vmem, size = 0x8000, scoped, tag = 'input window, operand 8, single buffered']
    #allocation12 [shape = 's32[1]{0}', space=sflag, size = 0x4, scoped, tag = 'scoped memory for tpu_custom_call.1']
    #allocation13 [shape = 'u8[8192]{0}', space=vmem, size = 0x2000, scoped, tag = 'output window, operand 0, single buffered']
    #allocation14 [shape = 'u8[8192]{0}', space=vmem, size = 0x2000, scoped, tag = 'output window, operand 1, single buffered']
    #allocation15 [shape = 's32[1]{0}', space=sflag, size = 0x4, scoped, tag = 'scoped memory for tpu_custom_call.1']
    %17 = vsyncpa [#allocation3], 0
    %18 = vsyncpa [#allocation6], 0
    %19 = vsyncpa [#allocation9], 0
    %20 = vsyncpa [#allocation12], 0
    %21 = vsyncpa [#allocation4], 0
    %22 = vsyncpa [#allocation15], 0
    // Predicated region
    $region2: #{tpu_custom_call.1} parent=1 // pred_check
      _
    $region3: #{tpu_custom_call.1} parent=1 // pred_check_branch
      %24 = sbr.rel (0) target = $region5
    $region4: #{tpu_custom_call.1} parent=1 // pred_region
      %s26 = ssub.s32 128, 128
      %27 = vsyncadd [#allocation3], %s26
      %s28 = sshll.u32 [#allocation2], 4
      %s29 = int_to_ptr.vmem [resolvable:$true] %s28
      %34 = dma.hbm_to_vmem [thread:$0]  %s0, 128, %s29, [#allocation3], 64, 64, 4
    $region5: #{tpu_custom_call.1} parent=1 // pred_fallthru
      _
    // Predicated region
    $region6: #{tpu_custom_call.1} parent=1 // pred_check
      _
    $region7: #{tpu_custom_call.1} parent=1 // pred_check_branch
      %36 = sbr.rel (0) target = $region9
    $region8: #{tpu_custom_call.1} parent=1 // pred_region
      %s38 = ssub.s32 256, 256
      %39 = vsyncadd [#allocation6], %s38
      %s40 = sshll.u32 [#allocation5], 4
      %s41 = int_to_ptr.vmem [resolvable:$true] %s40
      %46 = dma.hbm_to_vmem [thread:$0]  %s1, 256, %s41, [#allocation6], 128, 128, 8
    $region9: #{tpu_custom_call.1} parent=1 // pred_fallthru
      _
    // Predicated region
    $region10: #{tpu_custom_call.1} parent=1 // pred_check
      _
    $region11: #{tpu_custom_call.1} parent=1 // pred_check_branch
      %48 = sbr.rel (0) target = $region13
    $region12: #{tpu_custom_call.1} parent=1 // pred_region
      %s50 = ssub.s32 1024, 1024
      %51 = vsyncadd [#allocation6], %s50
      %s52 = sshll.u32 [#allocation7], 4
      %s53 = int_to_ptr.vmem [resolvable:$true] %s52
      %58 = dma.hbm_to_vmem [thread:$0]  %s2, 1024, %s53, [#allocation6], 64, 64, 4
    $region13: #{tpu_custom_call.1} parent=1 // pred_fallthru
      _
    // Predicated region
    $region14: #{tpu_custom_call.1} parent=1 // pred_check
      _
    $region15: #{tpu_custom_call.1} parent=1 // pred_check_branch
      %60 = sbr.rel (0) target = $region17
    $region16: #{tpu_custom_call.1} parent=1 // pred_region
      _
    $region17: #{tpu_custom_call.1} parent=1 // pred_fallthru
      _
    // Predicated region
    $region18: #{tpu_custom_call.1} parent=1 // pred_check
      _
    $region19: #{tpu_custom_call.1} parent=1 // pred_check_branch
      %62 = sbr.rel (0) target = $region21
    $region20: #{tpu_custom_call.1} parent=1 // pred_region
      %s64 = ssub.s32 1024, 1024
      %65 = vsyncadd [#allocation9], %s64
      %s66 = sshll.u32 [#allocation8], 4
      %s67 = int_to_ptr.vmem [resolvable:$true] %s66
      %72 = dma.hbm_to_vmem [thread:$0]  %s4, 1024, %s67, [#allocation9], 64, 64, 4
    $region21: #{tpu_custom_call.1} parent=1 // pred_fallthru
      _
    // Predicated region
    $region22: #{tpu_custom_call.1} parent=1 // pred_check
      _
    $region23: #{tpu_custom_call.1} parent=1 // pred_check_branch
      %74 = sbr.rel (0) target = $region25
    $region24: #{tpu_custom_call.1} parent=1 // pred_region
      _
    $region25: #{tpu_custom_call.1} parent=1 // pred_fallthru
      _
    // Predicated region
    $region26: #{tpu_custom_call.1} parent=1 // pred_check
      _
    $region27: #{tpu_custom_call.1} parent=1 // pred_check_branch
      %76 = sbr.rel (0) target = $region29
    $region28: #{tpu_custom_call.1} parent=1 // pred_region
      %s78 = ssub.s32 1024, 1024
      %79 = vsyncadd [#allocation9], %s78
      %s80 = sshll.u32 [#allocation10], 4
      %s81 = int_to_ptr.vmem [resolvable:$true] %s80
      %86 = dma.hbm_to_vmem [thread:$0]  %s6, 1024, %s81, [#allocation9], 64, 64, 4
    $region29: #{tpu_custom_call.1} parent=1 // pred_fallthru
      _
    // Predicated region
    $region30: #{tpu_custom_call.1} parent=1 // pred_check
      _
    $region31: #{tpu_custom_call.1} parent=1 // pred_check_branch
      %88 = sbr.rel (0) target = $region33
    $region32: #{tpu_custom_call.1} parent=1 // pred_region
      _
    $region33: #{tpu_custom_call.1} parent=1 // pred_fallthru
      _
    // Predicated region
    $region34: #{tpu_custom_call.1} parent=1 // pred_check
      _
    $region35: #{tpu_custom_call.1} parent=1 // pred_check_branch
      %90 = sbr.rel (0) target = $region37
    $region36: #{tpu_custom_call.1} parent=1 // pred_region
      %s92 = ssub.s32 1024, 1024
      %93 = vsyncadd [#allocation12], %s92
      %s94 = sshll.u32 [#allocation11], 4
      %s95 = int_to_ptr.vmem [resolvable:$true] %s94
      %100 = dma.hbm_to_vmem [thread:$0]  %s8, 1024, %s95, [#allocation12], 64, 64, 4
    $region37: #{tpu_custom_call.1} parent=1 // pred_fallthru
      _
    // Predicated region
    $region38: #{tpu_custom_call.1} parent=1 // pred_check
      _
    $region39: #{tpu_custom_call.1} parent=1 // pred_check_branch
      %102 = sbr.rel (0) target = $region41
    $region40: #{tpu_custom_call.1} parent=1 // pred_region
      _
    $region41: #{tpu_custom_call.1} parent=1 // pred_fallthru
      _
    // Predicated region
    $region42: #{tpu_custom_call.1} parent=1 // pred_check
      _
    $region43: #{tpu_custom_call.1} parent=1 // pred_check_branch
      %104 = sbr.rel (0) target = $region45
    $region44: #{tpu_custom_call.1} parent=1 // pred_region
      %105 = dma.done [#allocation3], 128
    $region45: #{tpu_custom_call.1} parent=1 // pred_fallthru
      _
    // Predicated region
    $region46: #{tpu_custom_call.1} parent=1 // pred_check
      _
    $region47: #{tpu_custom_call.1} parent=1 // pred_check_branch
      %107 = sbr.rel (0) target = $region49
    $region48: #{tpu_custom_call.1} parent=1 // pred_region
      %108 = dma.done [#allocation6], 256
    $region49: #{tpu_custom_call.1} parent=1 // pred_fallthru
      _
    // Predicated region
    $region50: #{tpu_custom_call.1} parent=1 // pred_check
      _
    $region51: #{tpu_custom_call.1} parent=1 // pred_check_branch
      %110 = sbr.rel (0) target = $region53
    $region52: #{tpu_custom_call.1} parent=1 // pred_region
      %111 = dma.done [#allocation6], 1024
    $region53: #{tpu_custom_call.1} parent=1 // pred_fallthru
      _
    // Predicated region
    $region54: #{tpu_custom_call.1} parent=1 // pred_check
      _
    $region55: #{tpu_custom_call.1} parent=1 // pred_check_branch
      %113 = sbr.rel (0) target = $region57
    $region56: #{tpu_custom_call.1} parent=1 // pred_region
      %114 = dma.done [#allocation9], 1024
    $region57: #{tpu_custom_call.1} parent=1 // pred_fallthru
      _
    // Predicated region
    $region58: #{tpu_custom_call.1} parent=1 // pred_check
      _
    $region59: #{tpu_custom_call.1} parent=1 // pred_check_branch
      %116 = sbr.rel (0) target = $region61
    $region60: #{tpu_custom_call.1} parent=1 // pred_region
      %117 = dma.done [#allocation9], 1024
    $region61: #{tpu_custom_call.1} parent=1 // pred_fallthru
      _
    // Predicated region
    $region62: #{tpu_custom_call.1} parent=1 // pred_check
      _
    $region63: #{tpu_custom_call.1} parent=1 // pred_check_branch
      %119 = sbr.rel (0) target = $region65
    $region64: #{tpu_custom_call.1} parent=1 // pred_region
      %120 = dma.done [#allocation12], 1024
    $region65: #{tpu_custom_call.1} parent=1 // pred_fallthru
      _
    %v122 = vld [vmem:[#allocation2] sm:$0xf]
    %v123 = vld [vmem:[#allocation2 + $0x4] sm:$0xf]
    %v124 = vld [vmem:[#allocation7] sm:$0xf]
    %v125 = vld [vmem:[#allocation7 + $0x4] sm:$0xf]
    %v126 = vld [vmem:[#allocation7 + $0x8] sm:$0xf]
    %v127 = vld [vmem:[#allocation7 + $0xc] sm:$0xf]
    %v128 = vld [vmem:[#allocation7 + $0x10] sm:$0xf]
    %v129 = vld [vmem:[#allocation7 + $0x14] sm:$0xf]
    %v130 = vld [vmem:[#allocation7 + $0x18] sm:$0xf]
    %v131 = vld [vmem:[#allocation7 + $0x1c] sm:$0xf]
    %v132 = vld [vmem:[#allocation7 + $0x20] sm:$0xf]
    %v133 = vld [vmem:[#allocation7 + $0x24] sm:$0xf]
    %v134 = vld [vmem:[#allocation7 + $0x28] sm:$0xf]
    %v135 = vld [vmem:[#allocation7 + $0x2c] sm:$0xf]
    %v136 = vld [vmem:[#allocation7 + $0x30] sm:$0xf]
    %v137 = vld [vmem:[#allocation7 + $0x34] sm:$0xf]
    %v138 = vld [vmem:[#allocation7 + $0x38] sm:$0xf]
    %v139 = vld [vmem:[#allocation7 + $0x3c] sm:$0xf]
    %v140 = vld [vmem:[%s3] sm:$0x1]
    %v142 = vlaneseq
    %v143 = vshrl.u32 %v142, 7
    %v144 = vsub.s32 0, %v143
    %v145 = vrot.slane %v140, %v144
    %v149 = vunpack.c.l.b16 %v122
    %v150 = vunpack.c.l.b16 %v123
    %v151 = vpack.c.b16 %v150, %v149
    %v169 = vunpack.c.l.b16 %v124
    %v170 = vunpack.c.l.b16 %v125
    %v171 = vunpack.c.l.b16 %v126
    %v172 = vunpack.c.l.b16 %v127
    %v173 = vunpack.c.l.b16 %v128
    %v174 = vunpack.c.l.b16 %v129
    %v175 = vunpack.c.l.b16 %v130
    %v176 = vunpack.c.l.b16 %v131
    %v177 = vunpack.c.l.b16 %v132
    %v178 = vunpack.c.l.b16 %v133
    %v179 = vunpack.c.l.b16 %v134
    %v180 = vunpack.c.l.b16 %v135
    %v181 = vunpack.c.l.b16 %v136
    %v182 = vunpack.c.l.b16 %v137
    %v183 = vunpack.c.l.b16 %v138
    %v184 = vunpack.c.l.b16 %v139
    %v185 = vpack.c.b16 %v170, %v169
    %v186 = vpack.c.b16 %v172, %v171
    %v187 = vpack.c.b16 %v174, %v173
    %v188 = vpack.c.b16 %v176, %v175
    %v189 = vpack.c.b16 %v178, %v177
    %v190 = vpack.c.b16 %v180, %v179
    %v191 = vpack.c.b16 %v182, %v181
    %v192 = vpack.c.b16 %v184, %v183
    %201 = vmatprep.subr.bf16.mxu0 0
    %202 = vmatpush1.bf16.msra.mxu0 %v185
    %203 = vmatprep.subr.bf16.mxu0 0
    %204 = vmatpush1.bf16.msra.mxu0 %v186
    %205 = vmatprep.subr.bf16.mxu0 0
    %206 = vmatpush1.bf16.msra.mxu0 %v187
    %207 = vmatprep.subr.bf16.mxu0 0
    %208 = vmatpush1.bf16.msra.mxu0 %v188
    %209 = vmatprep.subr.bf16.mxu0 0
    %210 = vmatpush1.bf16.msra.mxu0 %v189
    %211 = vmatprep.subr.bf16.mxu0 0
    %212 = vmatpush1.bf16.msra.mxu0 %v190
    %213 = vmatprep.subr.bf16.mxu0 0
    %214 = vmatpush1.bf16.msra.mxu0 %v191
    %215 = vmatprep.subr.bf16.mxu0 0
    %216 = vmatpush1.bf16.msra.mxu0 %v192
    %217 = vmatprep.subr.bf16.mxu0 0
    %218 = vmatpush1.bf16.msra.mxu0 0
    %219 = vmatprep.subr.bf16.mxu0 0
    %220 = vmatpush1.bf16.msra.mxu0 0
    %221 = vmatprep.subr.bf16.mxu0 0
    %222 = vmatpush1.bf16.msra.mxu0 0
    %223 = vmatprep.subr.bf16.mxu0 0
    %224 = vmatpush1.bf16.msra.mxu0 0
    %225 = vmatprep.subr.bf16.mxu0 0
    %226 = vmatpush1.bf16.msra.mxu0 0
    %227 = vmatprep.subr.bf16.mxu0 0
    %228 = vmatpush1.bf16.msra.mxu0 0
    %229 = vmatprep.subr.bf16.mxu0 0
    %230 = vmatpush1.bf16.msra.mxu0 0
    %231 = vmatprep.subr.bf16.mxu0 0
    %232 = vmatpush1.bf16.msra.mxu0 0
    %233 = vmatprep.mubr.bf16.mxu0 0
    %234 = vmatmul.mubr.bf16.gmra.mrb[0].mxu0 %v151
    %v235 = vpop.f32.mrb[0].mxu0
    %v236 = vadd.f32 %v145, %v235
    %v237 = vpop.f32.mrb[0].mxu0
    %v238 = vpop.f32.mrb[0].mxu0
    %v239 = vadd.f32 %v145, %v238
    %v240 = vpop.f32.mrb[0].mxu0
    %241 = vdwg.mxu0
    %v242 = vmul.f32 %v236, 0.2
    %v243 = vmul.f32 %v239, 0.2
    %v244 = vmax.f32 %v236, %v242
    %v245 = vmax.f32 %v239, %v243
    %v246 = vpack.c.bf16 %v245, %v244
    %v247 = vld [vmem:[#allocation8] sm:$0xf]
    %v248 = vld [vmem:[#allocation8 + $0x4] sm:$0xf]
    %v249 = vld [vmem:[#allocation8 + $0x8] sm:$0xf]
    %v250 = vld [vmem:[#allocation8 + $0xc] sm:$0xf]
    %v251 = vld [vmem:[#allocation8 + $0x10] sm:$0xf]
    %v252 = vld [vmem:[#allocation8 + $0x14] sm:$0xf]
    %v253 = vld [vmem:[#allocation8 + $0x18] sm:$0xf]
    %v254 = vld [vmem:[#allocation8 + $0x1c] sm:$0xf]
    %v255 = vld [vmem:[#allocation8 + $0x20] sm:$0xf]
    %v256 = vld [vmem:[#allocation8 + $0x24] sm:$0xf]
    %v257 = vld [vmem:[#allocation8 + $0x28] sm:$0xf]
    %v258 = vld [vmem:[#allocation8 + $0x2c] sm:$0xf]
    %v259 = vld [vmem:[#allocation8 + $0x30] sm:$0xf]
    %v260 = vld [vmem:[#allocation8 + $0x34] sm:$0xf]
    %v261 = vld [vmem:[#allocation8 + $0x38] sm:$0xf]
    %v262 = vld [vmem:[#allocation8 + $0x3c] sm:$0xf]
    %v263 = vld [vmem:[%s5] sm:$0x1]
    %v265 = vlaneseq
    %v266 = vshrl.u32 %v265, 7
    %v267 = vsub.s32 0, %v266
    %v268 = vrot.slane %v263, %v267
    %v286 = vunpack.c.l.b16 %v247
    %v287 = vunpack.c.l.b16 %v248
    %v288 = vunpack.c.l.b16 %v249
    %v289 = vunpack.c.l.b16 %v250
    %v290 = vunpack.c.l.b16 %v251
    %v291 = vunpack.c.l.b16 %v252
    %v292 = vunpack.c.l.b16 %v253
    %v293 = vunpack.c.l.b16 %v254
    %v294 = vunpack.c.l.b16 %v255
    %v295 = vunpack.c.l.b16 %v256
    %v296 = vunpack.c.l.b16 %v257
    %v297 = vunpack.c.l.b16 %v258
    %v298 = vunpack.c.l.b16 %v259
    %v299 = vunpack.c.l.b16 %v260
    %v300 = vunpack.c.l.b16 %v261
    %v301 = vunpack.c.l.b16 %v262
    %v302 = vpack.c.b16 %v287, %v286
    %v303 = vpack.c.b16 %v289, %v288
    %v304 = vpack.c.b16 %v291, %v290
    %v305 = vpack.c.b16 %v293, %v292
    %v306 = vpack.c.b16 %v295, %v294
    %v307 = vpack.c.b16 %v297, %v296
    %v308 = vpack.c.b16 %v299, %v298
    %v309 = vpack.c.b16 %v301, %v300
    %318 = vmatprep.subr.bf16.mxu0 0
    %319 = vmatpush1.bf16.msra.mxu0 %v302
    %320 = vmatprep.subr.bf16.mxu0 0
    %321 = vmatpush1.bf16.msra.mxu0 %v303
    %322 = vmatprep.subr.bf16.mxu0 0
    %323 = vmatpush1.bf16.msra.mxu0 %v304
    %324 = vmatprep.subr.bf16.mxu0 0
    %325 = vmatpush1.bf16.msra.mxu0 %v305
    %326 = vmatprep.subr.bf16.mxu0 0
    %327 = vmatpush1.bf16.msra.mxu0 %v306
    %328 = vmatprep.subr.bf16.mxu0 0
    %329 = vmatpush1.bf16.msra.mxu0 %v307
    %330 = vmatprep.subr.bf16.mxu0 0
    %331 = vmatpush1.bf16.msra.mxu0 %v308
    %332 = vmatprep.subr.bf16.mxu0 0
    %333 = vmatpush1.bf16.msra.mxu0 %v309
    %334 = vmatprep.subr.bf16.mxu0 0
    %335 = vmatpush1.bf16.msra.mxu0 0
    %336 = vmatprep.subr.bf16.mxu0 0
    %337 = vmatpush1.bf16.msra.mxu0 0
    %338 = vmatprep.subr.bf16.mxu0 0
    %339 = vmatpush1.bf16.msra.mxu0 0
    %340 = vmatprep.subr.bf16.mxu0 0
    %341 = vmatpush1.bf16.msra.mxu0 0
    %342 = vmatprep.subr.bf16.mxu0 0
    %343 = vmatpush1.bf16.msra.mxu0 0
    %344 = vmatprep.subr.bf16.mxu0 0
    %345 = vmatpush1.bf16.msra.mxu0 0
    %346 = vmatprep.subr.bf16.mxu0 0
    %347 = vmatpush1.bf16.msra.mxu0 0
    %348 = vmatprep.subr.bf16.mxu0 0
    %349 = vmatpush1.bf16.msra.mxu0 0
    %350 = vmatprep.mubr.bf16.mxu0 0
    %351 = vmatmul.mubr.bf16.gmra.mrb[0].mxu0 %v246
    %v352 = vpop.f32.mrb[0].mxu0
    %v353 = vadd.f32 %v268, %v352
    %v354 = vpop.f32.mrb[0].mxu0
    %v355 = vpop.f32.mrb[0].mxu0
    %v356 = vadd.f32 %v268, %v355
    %v357 = vpop.f32.mrb[0].mxu0
    %358 = vdwg.mxu0
    %v359 = vld [vmem:[#allocation5] sm:$0xff]
    %v360 = vld [vmem:[#allocation5 + $0x8] sm:$0xff]
    %v361 = vadd.f32 %v353, %v359
    %v362 = vadd.f32 %v356, %v360
    %363 = vst [vmem:[#allocation14] sm:$0xff] %v361
    %364 = vst [vmem:[#allocation14 + $0x8] sm:$0xff] %v362
    %v365 = vpack.c.bf16 %v362, %v361
    %v366 = vld [vmem:[#allocation10] sm:$0xf]
    %v367 = vld [vmem:[#allocation10 + $0x4] sm:$0xf]
    %v368 = vld [vmem:[#allocation10 + $0x8] sm:$0xf]
    %v369 = vld [vmem:[#allocation10 + $0xc] sm:$0xf]
    %v370 = vld [vmem:[#allocation10 + $0x10] sm:$0xf]
    %v371 = vld [vmem:[#allocation10 + $0x14] sm:$0xf]
    %v372 = vld [vmem:[#allocation10 + $0x18] sm:$0xf]
    %v373 = vld [vmem:[#allocation10 + $0x1c] sm:$0xf]
    %v374 = vld [vmem:[#allocation10 + $0x20] sm:$0xf]
    %v375 = vld [vmem:[#allocation10 + $0x24] sm:$0xf]
    %v376 = vld [vmem:[#allocation10 + $0x28] sm:$0xf]
    %v377 = vld [vmem:[#allocation10 + $0x2c] sm:$0xf]
    %v378 = vld [vmem:[#allocation10 + $0x30] sm:$0xf]
    %v379 = vld [vmem:[#allocation10 + $0x34] sm:$0xf]
    %v380 = vld [vmem:[#allocation10 + $0x38] sm:$0xf]
    %v381 = vld [vmem:[#allocation10 + $0x3c] sm:$0xf]
    %v382 = vld [vmem:[%s7] sm:$0x1]
    %v384 = vlaneseq
    %v385 = vshrl.u32 %v384, 7
    %v386 = vsub.s32 0, %v385
    %v387 = vrot.slane %v382, %v386
    %v405 = vunpack.c.l.b16 %v366
    %v406 = vunpack.c.l.b16 %v367
    %v407 = vunpack.c.l.b16 %v368
    %v408 = vunpack.c.l.b16 %v369
    %v409 = vunpack.c.l.b16 %v370
    %v410 = vunpack.c.l.b16 %v371
    %v411 = vunpack.c.l.b16 %v372
    %v412 = vunpack.c.l.b16 %v373
    %v413 = vunpack.c.l.b16 %v374
    %v414 = vunpack.c.l.b16 %v375
    %v415 = vunpack.c.l.b16 %v376
    %v416 = vunpack.c.l.b16 %v377
    %v417 = vunpack.c.l.b16 %v378
    %v418 = vunpack.c.l.b16 %v379
    %v419 = vunpack.c.l.b16 %v380
    %v420 = vunpack.c.l.b16 %v381
    %v421 = vpack.c.b16 %v406, %v405
    %v422 = vpack.c.b16 %v408, %v407
    %v423 = vpack.c.b16 %v410, %v409
    %v424 = vpack.c.b16 %v412, %v411
    %v425 = vpack.c.b16 %v414, %v413
    %v426 = vpack.c.b16 %v416, %v415
    %v427 = vpack.c.b16 %v418, %v417
    %v428 = vpack.c.b16 %v420, %v419
    %437 = vmatprep.subr.bf16.mxu0 0
    %438 = vmatpush1.bf16.msra.mxu0 %v421
    %439 = vmatprep.subr.bf16.mxu0 0
    %440 = vmatpush1.bf16.msra.mxu0 %v422
    %441 = vmatprep.subr.bf16.mxu0 0
    %442 = vmatpush1.bf16.msra.mxu0 %v423
    %443 = vmatprep.subr.bf16.mxu0 0
    %444 = vmatpush1.bf16.msra.mxu0 %v424
    %445 = vmatprep.subr.bf16.mxu0 0
    %446 = vmatpush1.bf16.msra.mxu0 %v425
    %447 = vmatprep.subr.bf16.mxu0 0
    %448 = vmatpush1.bf16.msra.mxu0 %v426
    %449 = vmatprep.subr.bf16.mxu0 0
    %450 = vmatpush1.bf16.msra.mxu0 %v427
    %451 = vmatprep.subr.bf16.mxu0 0
    %452 = vmatpush1.bf16.msra.mxu0 %v428
    %453 = vmatprep.subr.bf16.mxu0 0
    %454 = vmatpush1.bf16.msra.mxu0 0
    %455 = vmatprep.subr.bf16.mxu0 0
    %456 = vmatpush1.bf16.msra.mxu0 0
    %457 = vmatprep.subr.bf16.mxu0 0
    %458 = vmatpush1.bf16.msra.mxu0 0
    %459 = vmatprep.subr.bf16.mxu0 0
    %460 = vmatpush1.bf16.msra.mxu0 0
    %461 = vmatprep.subr.bf16.mxu0 0
    %462 = vmatpush1.bf16.msra.mxu0 0
    %463 = vmatprep.subr.bf16.mxu0 0
    %464 = vmatpush1.bf16.msra.mxu0 0
    %465 = vmatprep.subr.bf16.mxu0 0
    %466 = vmatpush1.bf16.msra.mxu0 0
    %467 = vmatprep.subr.bf16.mxu0 0
    %468 = vmatpush1.bf16.msra.mxu0 0
    %469 = vmatprep.mubr.bf16.mxu0 0
    %470 = vmatmul.mubr.bf16.gmra.mrb[0].mxu0 %v365
    %v471 = vpop.f32.mrb[0].mxu0
    %v472 = vadd.f32 %v387, %v471
    %v473 = vpop.f32.mrb[0].mxu0
    %v474 = vpop.f32.mrb[0].mxu0
    %v475 = vadd.f32 %v387, %v474
    %v476 = vpop.f32.mrb[0].mxu0
    %477 = vdwg.mxu0
    %v478 = vmul.f32 %v472, 0.2
    %v479 = vmul.f32 %v475, 0.2
    %v480 = vmax.f32 %v472, %v478
    %v481 = vmax.f32 %v475, %v479
    %v482 = vpack.c.bf16 %v481, %v480
    %v483 = vld [vmem:[#allocation11] sm:$0xf]
    %v484 = vld [vmem:[#allocation11 + $0x4] sm:$0xf]
    %v485 = vld [vmem:[#allocation11 + $0x8] sm:$0xf]
    %v486 = vld [vmem:[#allocation11 + $0xc] sm:$0xf]
    %v487 = vld [vmem:[#allocation11 + $0x10] sm:$0xf]
    %v488 = vld [vmem:[#allocation11 + $0x14] sm:$0xf]
    %v489 = vld [vmem:[#allocation11 + $0x18] sm:$0xf]
    %v490 = vld [vmem:[#allocation11 + $0x1c] sm:$0xf]
    %v491 = vld [vmem:[#allocation11 + $0x20] sm:$0xf]
    %v492 = vld [vmem:[#allocation11 + $0x24] sm:$0xf]
    %v493 = vld [vmem:[#allocation11 + $0x28] sm:$0xf]
    %v494 = vld [vmem:[#allocation11 + $0x2c] sm:$0xf]
    %v495 = vld [vmem:[#allocation11 + $0x30] sm:$0xf]
    %v496 = vld [vmem:[#allocation11 + $0x34] sm:$0xf]
    %v497 = vld [vmem:[#allocation11 + $0x38] sm:$0xf]
    %v498 = vld [vmem:[#allocation11 + $0x3c] sm:$0xf]
    %v499 = vld [vmem:[%s9] sm:$0x1]
    %v501 = vlaneseq
    %v502 = vshrl.u32 %v501, 7
    %v503 = vsub.s32 0, %v502
    %v504 = vrot.slane %v499, %v503
    %v522 = vunpack.c.l.b16 %v483
    %v523 = vunpack.c.l.b16 %v484
    %v524 = vunpack.c.l.b16 %v485
    %v525 = vunpack.c.l.b16 %v486
    %v526 = vunpack.c.l.b16 %v487
    %v527 = vunpack.c.l.b16 %v488
    %v528 = vunpack.c.l.b16 %v489
    %v529 = vunpack.c.l.b16 %v490
    %v530 = vunpack.c.l.b16 %v491
    %v531 = vunpack.c.l.b16 %v492
    %v532 = vunpack.c.l.b16 %v493
    %v533 = vunpack.c.l.b16 %v494
    %v534 = vunpack.c.l.b16 %v495
    %v535 = vunpack.c.l.b16 %v496
    %v536 = vunpack.c.l.b16 %v497
    %v537 = vunpack.c.l.b16 %v498
    %v538 = vpack.c.b16 %v523, %v522
    %v539 = vpack.c.b16 %v525, %v524
    %v540 = vpack.c.b16 %v527, %v526
    %v541 = vpack.c.b16 %v529, %v528
    %v542 = vpack.c.b16 %v531, %v530
    %v543 = vpack.c.b16 %v533, %v532
    %v544 = vpack.c.b16 %v535, %v534
    %v545 = vpack.c.b16 %v537, %v536
    %554 = vmatprep.subr.bf16.mxu0 0
    %555 = vmatpush1.bf16.msra.mxu0 %v538
    %556 = vmatprep.subr.bf16.mxu0 0
    %557 = vmatpush1.bf16.msra.mxu0 %v539
    %558 = vmatprep.subr.bf16.mxu0 0
    %559 = vmatpush1.bf16.msra.mxu0 %v540
    %560 = vmatprep.subr.bf16.mxu0 0
    %561 = vmatpush1.bf16.msra.mxu0 %v541
    %562 = vmatprep.subr.bf16.mxu0 0
    %563 = vmatpush1.bf16.msra.mxu0 %v542
    %564 = vmatprep.subr.bf16.mxu0 0
    %565 = vmatpush1.bf16.msra.mxu0 %v543
    %566 = vmatprep.subr.bf16.mxu0 0
    %567 = vmatpush1.bf16.msra.mxu0 %v544
    %568 = vmatprep.subr.bf16.mxu0 0
    %569 = vmatpush1.bf16.msra.mxu0 %v545
    %570 = vmatprep.subr.bf16.mxu0 0
    %571 = vmatpush1.bf16.msra.mxu0 0
    %572 = vmatprep.subr.bf16.mxu0 0
    %573 = vmatpush1.bf16.msra.mxu0 0
    %574 = vmatprep.subr.bf16.mxu0 0
    %575 = vmatpush1.bf16.msra.mxu0 0
    %576 = vmatprep.subr.bf16.mxu0 0
    %577 = vmatpush1.bf16.msra.mxu0 0
    %578 = vmatprep.subr.bf16.mxu0 0
    %579 = vmatpush1.bf16.msra.mxu0 0
    %580 = vmatprep.subr.bf16.mxu0 0
    %581 = vmatpush1.bf16.msra.mxu0 0
    %582 = vmatprep.subr.bf16.mxu0 0
    %583 = vmatpush1.bf16.msra.mxu0 0
    %584 = vmatprep.subr.bf16.mxu0 0
    %585 = vmatpush1.bf16.msra.mxu0 0
    %586 = vmatprep.mubr.bf16.mxu0 0
    %587 = vmatmul.mubr.bf16.gmra.mrb[0].mxu0 %v482
    %v588 = vpop.f32.mrb[0].mxu0
    %v589 = vadd.f32 %v504, %v588
    %v590 = vpop.f32.mrb[0].mxu0
    %v591 = vpop.f32.mrb[0].mxu0
    %v592 = vadd.f32 %v504, %v591
    %v593 = vpop.f32.mrb[0].mxu0
    %594 = vdwg.mxu0
    %v595 = vmax.f32 %v589, 0.0
    %v596 = vmax.f32 %v592, 0.0
    %597 = vst [vmem:[#allocation13] sm:$0xff] %v595
    %598 = vst [vmem:[#allocation13 + $0x8] sm:$0xff] %v596
    // Predicated region
    $region66: #{tpu_custom_call.1} parent=1 // pred_check
      _
    $region67: #{tpu_custom_call.1} parent=1 // pred_check_branch
      %600 = sbr.rel (0) target = $region69
    $region68: #{tpu_custom_call.1} parent=1 // pred_region
      %s602 = ssub.s32 256, 256
      %603 = vsyncadd [#allocation4], %s602
      %s604 = sshll.u32 [#allocation13], 4
      %s605 = int_to_ptr.vmem [resolvable:$true] %s604
      %610 = dma.vmem_to_hbm [thread:$0]  %s605, 256, %s10, [#allocation4], 128, 128, 8
    $region69: #{tpu_custom_call.1} parent=1 // pred_fallthru
      _
    // Predicated region
    $region70: #{tpu_custom_call.1} parent=1 // pred_check
      _
    $region71: #{tpu_custom_call.1} parent=1 // pred_check_branch
      %612 = sbr.rel (0) target = $region73
    $region72: #{tpu_custom_call.1} parent=1 // pred_region
      %s614 = ssub.s32 256, 256
      %615 = vsyncadd [#allocation15], %s614
      %s616 = sshll.u32 [#allocation14], 4
      %s617 = int_to_ptr.vmem [resolvable:$true] %s616
      %622 = dma.vmem_to_hbm [thread:$0]  %s617, 256, %s11, [#allocation15], 128, 128, 8
    $region73: #{tpu_custom_call.1} parent=1 // pred_fallthru
      _
    // Predicated region
    $region74: #{tpu_custom_call.1} parent=1 // pred_check
      _
    $region75: #{tpu_custom_call.1} parent=1 // pred_check_branch
      %624 = sbr.rel (0) target = $region77
    $region76: #{tpu_custom_call.1} parent=1 // pred_region
      %625 = dma.done [#allocation4], 256
    $region77: #{tpu_custom_call.1} parent=1 // pred_fallthru
      _
    // Predicated region
    $region78: #{tpu_custom_call.1} parent=1 // pred_check
      _
    $region79: #{tpu_custom_call.1} parent=1 // pred_check_branch
      %627 = sbr.rel (0) target = $region81
    $region80: #{tpu_custom_call.1} parent=1 // pred_region
      %628 = dma.done [#allocation15], 256
    $region81: #{tpu_custom_call.1} parent=1 // pred_fallthru
      _
    %629 = vsyncpa [#allocation3], 1
    %630 = vsyncpa [#allocation6], 1
    %631 = vsyncpa [#allocation9], 1
    %632 = vsyncpa [#allocation12], 1
    %633 = vsyncpa [#allocation4], 1
    %634 = vsyncpa [#allocation15], 1

// kernel: tpu_custom_call.1
$region0: #{tpu_custom_call.1}
  #allocation0 [shape = 'u32[]', space=smem, size = 0x4, offset = 0x4, fixed_abs, tag = 'smem constant byte address 0x4 - core index']
  #allocation1 [shape = 'u32[144,128]{1,0:T(1,128)}', space=vmem, size = 0x12000, scoped, tag = 'internal scratch']
  %s0 = inlined_call_operand.hbm [shape: bf16[16,128], index: 0, kind: input, shape index: {}]
  %s1 = inlined_call_operand.hbm [shape: f32[16,128], index: 1, kind: input, shape index: {}]
  %s2 = inlined_call_operand.hbm [shape: bf16[128,128], index: 2, kind: input, shape index: {}]
  %s3 = inlined_call_operand.vmem [shape: f32[1,128], index: 3, kind: input, shape index: {}]
  %s4 = inlined_call_operand.hbm [shape: bf16[128,128], index: 4, kind: input, shape index: {}]
  %s5 = inlined_call_operand.vmem [shape: f32[1,128], index: 5, kind: input, shape index: {}]
  %s6 = inlined_call_operand.hbm [shape: bf16[128,128], index: 6, kind: input, shape index: {}]
  %s7 = inlined_call_operand.vmem [shape: f32[1,128], index: 7, kind: input, shape index: {}]
  %s8 = inlined_call_operand.hbm [shape: bf16[128,128], index: 8, kind: input, shape index: {}]
  %s9 = inlined_call_operand.vmem [shape: f32[1,128], index: 9, kind: input, shape index: {}]
  %s10 = inlined_call_operand.hbm [shape: f32[16,128], index: 10, kind: output, shape index: {0}]
  %s11 = inlined_call_operand.hbm [shape: f32[16,128], index: 11, kind: output, shape index: {1}]
  %12 = xla_tuple %s10, %s11
  %s13 = sld [smem:[#allocation0]]
  $region82: #{tpu_custom_call.1} parent=0
    _
  %s15 = ssub.s32 1, %s13
  %s16 = scalar_select 0, %s15, %s13
  $region1: #{tpu_custom_call.1} parent=0
    #allocation2 [shape = 'u8[4096]{0}', space=vmem, size = 0x1000, scoped, tag = 'input window, operand 0, single buffered']
    #allocation3 [shape = 's32[1]{0}', space=sflag, size = 0x4, scoped, tag = 'scoped memory for tpu_custom_call.1']
    #allocation4 [shape = 's32[1]{0}', space=sflag, size = 0x4, scoped, tag = 'scoped memory for tpu_custom_call.1']
    #allocation5 [shape = 'u8[8192]{0}', space=vmem, size = 0x2000, scoped, tag = 'input window, operand 1, single buffered']
    #allocation6 [shape = 's32[1]{0}', space=sflag, size = 0x4, scoped, tag = 'scoped memory for tpu_custom_call.1']
    #allocation7 [shape = 'u8[32768]{0}', space=vmem, size = 0x8000, scoped, tag = 'input window, operand 2, single buffered']
    #allocation8 [shape = 'u8[32768]{0}', space=vmem, size = 0x8000, scoped, tag = 'input window, operand 4, single buffered']
    #allocation9 [shape = 's32[1]{0}', space=sflag, size = 0x4, scoped, tag = 'scoped memory for tpu_custom_call.1']
    #allocation10 [shape = 'u8[32768]{0}', space=vmem, size = 0x8000, scoped, tag = 'input window, operand 6, single buffered']
    #allocation11 [shape = 'u8[32768]{0}', space=vmem, size = 0x8000, scoped, tag = 'input window, operand 8, single buffered']
    #allocation12 [shape = 's32[1]{0}', space=sflag, size = 0x4, scoped, tag = 'scoped memory for tpu_custom_call.1']
    #allocation13 [shape = 'u8[8192]{0}', space=vmem, size = 0x2000, scoped, tag = 'output window, operand 0, single buffered']
    #allocation14 [shape = 'u8[8192]{0}', space=vmem, size = 0x2000, scoped, tag = 'output window, operand 1, single buffered']
    #allocation15 [shape = 's32[1]{0}', space=sflag, size = 0x4, scoped, tag = 'scoped memory for tpu_custom_call.1']
    %17 = vsyncpa [#allocation3], 0
    %18 = vsyncpa [#allocation6], 0
    %19 = vsyncpa [#allocation9], 0
    %20 = vsyncpa [#allocation12], 0
    %21 = vsyncpa [#allocation4], 0
    %22 = vsyncpa [#allocation15], 0
    // Predicated region
    $region2: #{tpu_custom_call.1} parent=1 // pred_check
      _
    $region3: #{tpu_custom_call.1} parent=1 // pred_check_branch
      %24 = sbr.rel (0) target = $region5
    $region4: #{tpu_custom_call.1} parent=1 // pred_region
      %s26 = ssub.s32 128, 128
      %27 = vsyncadd [#allocation3], %s26
      %s28 = sshll.u32 [#allocation2], 4
      %s29 = int_to_ptr.vmem [resolvable:$true] %s28
      %34 = dma.hbm_to_vmem [thread:$0]  %s0, 128, %s29, [#allocation3], 64, 64, 4
    $region5: #{tpu_custom_call.1} parent=1 // pred_fallthru
      _
    // Predicated region
    $region6: #{tpu_custom_call.1} parent=1 // pred_check
      _
    $region7: #{tpu_custom_call.1} parent=1 // pred_check_branch
      %36 = sbr.rel (0) target = $region9
    $region8: #{tpu_custom_call.1} parent=1 // pred_region
      %s38 = ssub.s32 256, 256
      %39 = vsyncadd [#allocation6], %s38
      %s40 = sshll.u32 [#allocation5], 4
      %s41 = int_to_ptr.vmem [resolvable:$true] %s40
      %46 = dma.hbm_to_vmem [thread:$0]  %s1, 256, %s41, [#allocation6], 128, 128, 8
    $region9: #{tpu_custom_call.1} parent=1 // pred_fallthru
      _
    // Predicated region
    $region10: #{tpu_custom_call.1} parent=1 // pred_check
      _
    $region11: #{tpu_custom_call.1} parent=1 // pred_check_branch
      %48 = sbr.rel (0) target = $region13
    $region12: #{tpu_custom_call.1} parent=1 // pred_region
      %s50 = ssub.s32 1024, 1024
      %51 = vsyncadd [#allocation6], %s50
      %s52 = sshll.u32 [#allocation7], 4
      %s53 = int_to_ptr.vmem [resolvable:$true] %s52
      %58 = dma.hbm_to_vmem [thread:$0]  %s2, 1024, %s53, [#allocation6], 64, 64, 4
    $region13: #{tpu_custom_call.1} parent=1 // pred_fallthru
      _
    // Predicated region
    $region14: #{tpu_custom_call.1} parent=1 // pred_check
      _
    $region15: #{tpu_custom_call.1} parent=1 // pred_check_branch
      %60 = sbr.rel (0) target = $region17
    $region16: #{tpu_custom_call.1} parent=1 // pred_region
      _
    $region17: #{tpu_custom_call.1} parent=1 // pred_fallthru
      _
    // Predicated region
    $region18: #{tpu_custom_call.1} parent=1 // pred_check
      _
    $region19: #{tpu_custom_call.1} parent=1 // pred_check_branch
      %62 = sbr.rel (0) target = $region21
    $region20: #{tpu_custom_call.1} parent=1 // pred_region
      %s64 = ssub.s32 1024, 1024
      %65 = vsyncadd [#allocation9], %s64
      %s66 = sshll.u32 [#allocation8], 4
      %s67 = int_to_ptr.vmem [resolvable:$true] %s66
      %72 = dma.hbm_to_vmem [thread:$0]  %s4, 1024, %s67, [#allocation9], 64, 64, 4
    $region21: #{tpu_custom_call.1} parent=1 // pred_fallthru
      _
    // Predicated region
    $region22: #{tpu_custom_call.1} parent=1 // pred_check
      _
    $region23: #{tpu_custom_call.1} parent=1 // pred_check_branch
      %74 = sbr.rel (0) target = $region25
    $region24: #{tpu_custom_call.1} parent=1 // pred_region
      _
    $region25: #{tpu_custom_call.1} parent=1 // pred_fallthru
      _
    // Predicated region
    $region26: #{tpu_custom_call.1} parent=1 // pred_check
      _
    $region27: #{tpu_custom_call.1} parent=1 // pred_check_branch
      %76 = sbr.rel (0) target = $region29
    $region28: #{tpu_custom_call.1} parent=1 // pred_region
      %s78 = ssub.s32 1024, 1024
      %79 = vsyncadd [#allocation9], %s78
      %s80 = sshll.u32 [#allocation10], 4
      %s81 = int_to_ptr.vmem [resolvable:$true] %s80
      %86 = dma.hbm_to_vmem [thread:$0]  %s6, 1024, %s81, [#allocation9], 64, 64, 4
    $region29: #{tpu_custom_call.1} parent=1 // pred_fallthru
      _
    // Predicated region
    $region30: #{tpu_custom_call.1} parent=1 // pred_check
      _
    $region31: #{tpu_custom_call.1} parent=1 // pred_check_branch
      %88 = sbr.rel (0) target = $region33
    $region32: #{tpu_custom_call.1} parent=1 // pred_region
      _
    $region33: #{tpu_custom_call.1} parent=1 // pred_fallthru
      _
    // Predicated region
    $region34: #{tpu_custom_call.1} parent=1 // pred_check
      _
    $region35: #{tpu_custom_call.1} parent=1 // pred_check_branch
      %90 = sbr.rel (0) target = $region37
    $region36: #{tpu_custom_call.1} parent=1 // pred_region
      %s92 = ssub.s32 1024, 1024
      %93 = vsyncadd [#allocation12], %s92
      %s94 = sshll.u32 [#allocation11], 4
      %s95 = int_to_ptr.vmem [resolvable:$true] %s94
      %100 = dma.hbm_to_vmem [thread:$0]  %s8, 1024, %s95, [#allocation12], 64, 64, 4
    $region37: #{tpu_custom_call.1} parent=1 // pred_fallthru
      _
    // Predicated region
    $region38: #{tpu_custom_call.1} parent=1 // pred_check
      _
    $region39: #{tpu_custom_call.1} parent=1 // pred_check_branch
      %102 = sbr.rel (0) target = $region41
    $region40: #{tpu_custom_call.1} parent=1 // pred_region
      _
    $region41: #{tpu_custom_call.1} parent=1 // pred_fallthru
      _
    // Predicated region
    $region42: #{tpu_custom_call.1} parent=1 // pred_check
      _
    $region43: #{tpu_custom_call.1} parent=1 // pred_check_branch
      %104 = sbr.rel (0) target = $region45
    $region44: #{tpu_custom_call.1} parent=1 // pred_region
      %105 = dma.done [#allocation3], 128
    $region45: #{tpu_custom_call.1} parent=1 // pred_fallthru
      _
    // Predicated region
    $region46: #{tpu_custom_call.1} parent=1 // pred_check
      _
    $region47: #{tpu_custom_call.1} parent=1 // pred_check_branch
      %107 = sbr.rel (0) target = $region49
    $region48: #{tpu_custom_call.1} parent=1 // pred_region
      %108 = dma.done [#allocation6], 256
    $region49: #{tpu_custom_call.1} parent=1 // pred_fallthru
      _
    // Predicated region
    $region50: #{tpu_custom_call.1} parent=1 // pred_check
      _
    $region51: #{tpu_custom_call.1} parent=1 // pred_check_branch
      %110 = sbr.rel (0) target = $region53
    $region52: #{tpu_custom_call.1} parent=1 // pred_region
      %111 = dma.done [#allocation6], 1024
    $region53: #{tpu_custom_call.1} parent=1 // pred_fallthru
      _
    // Predicated region
    $region54: #{tpu_custom_call.1} parent=1 // pred_check
      _
    $region55: #{tpu_custom_call.1} parent=1 // pred_check_branch
      %113 = sbr.rel (0) target = $region57
    $region56: #{tpu_custom_call.1} parent=1 // pred_region
      %114 = dma.done [#allocation9], 1024
    $region57: #{tpu_custom_call.1} parent=1 // pred_fallthru
      _
    // Predicated region
    $region58: #{tpu_custom_call.1} parent=1 // pred_check
      _
    $region59: #{tpu_custom_call.1} parent=1 // pred_check_branch
      %116 = sbr.rel (0) target = $region61
    $region60: #{tpu_custom_call.1} parent=1 // pred_region
      %117 = dma.done [#allocation9], 1024
    $region61: #{tpu_custom_call.1} parent=1 // pred_fallthru
      _
    // Predicated region
    $region62: #{tpu_custom_call.1} parent=1 // pred_check
      _
    $region63: #{tpu_custom_call.1} parent=1 // pred_check_branch
      %119 = sbr.rel (0) target = $region65
    $region64: #{tpu_custom_call.1} parent=1 // pred_region
      %120 = dma.done [#allocation12], 1024
    $region65: #{tpu_custom_call.1} parent=1 // pred_fallthru
      _
    %v122 = vld [vmem:[#allocation2] sm:$0xf]
    %v123 = vld [vmem:[#allocation2 + $0x4] sm:$0xf]
    %v124 = vld [vmem:[#allocation7] sm:$0xf]
    %v125 = vld [vmem:[#allocation7 + $0x4] sm:$0xf]
    %v126 = vld [vmem:[#allocation7 + $0x8] sm:$0xf]
    %v127 = vld [vmem:[#allocation7 + $0xc] sm:$0xf]
    %v128 = vld [vmem:[#allocation7 + $0x10] sm:$0xf]
    %v129 = vld [vmem:[#allocation7 + $0x14] sm:$0xf]
    %v130 = vld [vmem:[#allocation7 + $0x18] sm:$0xf]
    %v131 = vld [vmem:[#allocation7 + $0x1c] sm:$0xf]
    %v132 = vld [vmem:[#allocation7 + $0x20] sm:$0xf]
    %v133 = vld [vmem:[#allocation7 + $0x24] sm:$0xf]
    %v134 = vld [vmem:[#allocation7 + $0x28] sm:$0xf]
    %v135 = vld [vmem:[#allocation7 + $0x2c] sm:$0xf]
    %v136 = vld [vmem:[#allocation7 + $0x30] sm:$0xf]
    %v137 = vld [vmem:[#allocation7 + $0x34] sm:$0xf]
    %v138 = vld [vmem:[#allocation7 + $0x38] sm:$0xf]
    %v139 = vld [vmem:[#allocation7 + $0x3c] sm:$0xf]
    %v140 = vld [vmem:[%s3] sm:$0x1]
    %v142 = vlaneseq
    %v143 = vshrl.u32 %v142, 7
    %v144 = vsub.s32 0, %v143
    %v145 = vrot.slane %v140, %v144
    %v149 = vunpack.c.l.b16 %v122
    %v150 = vunpack.c.l.b16 %v123
    %v151 = vpack.c.b16 %v150, %v149
    %v169 = vunpack.c.l.b16 %v124
    %v170 = vunpack.c.l.b16 %v125
    %v171 = vunpack.c.l.b16 %v126
    %v172 = vunpack.c.l.b16 %v127
    %v173 = vunpack.c.l.b16 %v128
    %v174 = vunpack.c.l.b16 %v129
    %v175 = vunpack.c.l.b16 %v130
    %v176 = vunpack.c.l.b16 %v131
    %v177 = vunpack.c.l.b16 %v132
    %v178 = vunpack.c.l.b16 %v133
    %v179 = vunpack.c.l.b16 %v134
    %v180 = vunpack.c.l.b16 %v135
    %v181 = vunpack.c.l.b16 %v136
    %v182 = vunpack.c.l.b16 %v137
    %v183 = vunpack.c.l.b16 %v138
    %v184 = vunpack.c.l.b16 %v139
    %v185 = vpack.c.b16 %v170, %v169
    %v186 = vpack.c.b16 %v172, %v171
    %v187 = vpack.c.b16 %v174, %v173
    %v188 = vpack.c.b16 %v176, %v175
    %v189 = vpack.c.b16 %v178, %v177
    %v190 = vpack.c.b16 %v180, %v179
    %v191 = vpack.c.b16 %v182, %v181
    %v192 = vpack.c.b16 %v184, %v183
    %201 = vmatprep.subr.bf16.mxu0 0
    %202 = vmatpush1.bf16.msra.mxu0 %v185
    %203 = vmatprep.subr.bf16.mxu0 0
    %204 = vmatpush1.bf16.msra.mxu0 %v186
    %205 = vmatprep.subr.bf16.mxu0 0
    %206 = vmatpush1.bf16.msra.mxu0 %v187
    %207 = vmatprep.subr.bf16.mxu0 0
    %208 = vmatpush1.bf16.msra.mxu0 %v188
    %209 = vmatprep.subr.bf16.mxu0 0
    %210 = vmatpush1.bf16.msra.mxu0 %v189
    %211 = vmatprep.subr.bf16.mxu0 0
    %212 = vmatpush1.bf16.msra.mxu0 %v190
    %213 = vmatprep.subr.bf16.mxu0 0
    %214 = vmatpush1.bf16.msra.mxu0 %v191
    %215 = vmatprep.subr.bf16.mxu0 0
    %216 = vmatpush1.bf16.msra.mxu0 %v192
    %217 = vmatprep.subr.bf16.mxu0 0
    %218 = vmatpush1.bf16.msra.mxu0 0
    %219 = vmatprep.subr.bf16.mxu0 0
    %220 = vmatpush1.bf16.msra.mxu0 0
    %221 = vmatprep.subr.bf16.mxu0 0
    %222 = vmatpush1.bf16.msra.mxu0 0
    %223 = vmatprep.subr.bf16.mxu0 0
    %224 = vmatpush1.bf16.msra.mxu0 0
    %225 = vmatprep.subr.bf16.mxu0 0
    %226 = vmatpush1.bf16.msra.mxu0 0
    %227 = vmatprep.subr.bf16.mxu0 0
    %228 = vmatpush1.bf16.msra.mxu0 0
    %229 = vmatprep.subr.bf16.mxu0 0
    %230 = vmatpush1.bf16.msra.mxu0 0
    %231 = vmatprep.subr.bf16.mxu0 0
    %232 = vmatpush1.bf16.msra.mxu0 0
    %233 = vmatprep.mubr.bf16.mxu0 0
    %234 = vmatmul.mubr.bf16.gmra.mrb[0].mxu0 %v151
    %v235 = vpop.f32.mrb[0].mxu0
    %v236 = vadd.f32 %v145, %v235
    %v237 = vpop.f32.mrb[0].mxu0
    %v238 = vpop.f32.mrb[0].mxu0
    %v239 = vadd.f32 %v145, %v238
    %v240 = vpop.f32.mrb[0].mxu0
    %241 = vdwg.mxu0
    %v242 = vmul.f32 %v236, 0.2
    %v243 = vmul.f32 %v239, 0.2
    %v244 = vmax.f32 %v236, %v242
    %v245 = vmax.f32 %v239, %v243
    %v246 = vpack.c.bf16 %v245, %v244
    %v247 = vld [vmem:[#allocation8] sm:$0xf]
    %v248 = vld [vmem:[#allocation8 + $0x4] sm:$0xf]
    %v249 = vld [vmem:[#allocation8 + $0x8] sm:$0xf]
    %v250 = vld [vmem:[#allocation8 + $0xc] sm:$0xf]
    %v251 = vld [vmem:[#allocation8 + $0x10] sm:$0xf]
    %v252 = vld [vmem:[#allocation8 + $0x14] sm:$0xf]
    %v253 = vld [vmem:[#allocation8 + $0x18] sm:$0xf]
    %v254 = vld [vmem:[#allocation8 + $0x1c] sm:$0xf]
    %v255 = vld [vmem:[#allocation8 + $0x20] sm:$0xf]
    %v256 = vld [vmem:[#allocation8 + $0x24] sm:$0xf]
    %v257 = vld [vmem:[#allocation8 + $0x28] sm:$0xf]
    %v258 = vld [vmem:[#allocation8 + $0x2c] sm:$0xf]
    %v259 = vld [vmem:[#allocation8 + $0x30] sm:$0xf]
    %v260 = vld [vmem:[#allocation8 + $0x34] sm:$0xf]
    %v261 = vld [vmem:[#allocation8 + $0x38] sm:$0xf]
    %v262 = vld [vmem:[#allocation8 + $0x3c] sm:$0xf]
    %v263 = vld [vmem:[%s5] sm:$0x1]
    %v265 = vlaneseq
    %v266 = vshrl.u32 %v265, 7
    %v267 = vsub.s32 0, %v266
    %v268 = vrot.slane %v263, %v267
    %v286 = vunpack.c.l.b16 %v247
    %v287 = vunpack.c.l.b16 %v248
    %v288 = vunpack.c.l.b16 %v249
    %v289 = vunpack.c.l.b16 %v250
    %v290 = vunpack.c.l.b16 %v251
    %v291 = vunpack.c.l.b16 %v252
    %v292 = vunpack.c.l.b16 %v253
    %v293 = vunpack.c.l.b16 %v254
    %v294 = vunpack.c.l.b16 %v255
    %v295 = vunpack.c.l.b16 %v256
    %v296 = vunpack.c.l.b16 %v257
    %v297 = vunpack.c.l.b16 %v258
    %v298 = vunpack.c.l.b16 %v259
    %v299 = vunpack.c.l.b16 %v260
    %v300 = vunpack.c.l.b16 %v261
    %v301 = vunpack.c.l.b16 %v262
    %v302 = vpack.c.b16 %v287, %v286
    %v303 = vpack.c.b16 %v289, %v288
    %v304 = vpack.c.b16 %v291, %v290
    %v305 = vpack.c.b16 %v293, %v292
    %v306 = vpack.c.b16 %v295, %v294
    %v307 = vpack.c.b16 %v297, %v296
    %v308 = vpack.c.b16 %v299, %v298
    %v309 = vpack.c.b16 %v301, %v300
    %318 = vmatprep.subr.bf16.mxu0 0
    %319 = vmatpush1.bf16.msra.mxu0 %v302
    %320 = vmatprep.subr.bf16.mxu0 0
    %321 = vmatpush1.bf16.msra.mxu0 %v303
    %322 = vmatprep.subr.bf16.mxu0 0
    %323 = vmatpush1.bf16.msra.mxu0 %v304
    %324 = vmatprep.subr.bf16.mxu0 0
    %325 = vmatpush1.bf16.msra.mxu0 %v305
    %326 = vmatprep.subr.bf16.mxu0 0
    %327 = vmatpush1.bf16.msra.mxu0 %v306
    %328 = vmatprep.subr.bf16.mxu0 0
    %329 = vmatpush1.bf16.msra.mxu0 %v307
    %330 = vmatprep.subr.bf16.mxu0 0
    %331 = vmatpush1.bf16.msra.mxu0 %v308
    %332 = vmatprep.subr.bf16.mxu0 0
    %333 = vmatpush1.bf16.msra.mxu0 %v309
    %334 = vmatprep.subr.bf16.mxu0 0
    %335 = vmatpush1.bf16.msra.mxu0 0
    %336 = vmatprep.subr.bf16.mxu0 0
    %337 = vmatpush1.bf16.msra.mxu0 0
    %338 = vmatprep.subr.bf16.mxu0 0
    %339 = vmatpush1.bf16.msra.mxu0 0
    %340 = vmatprep.subr.bf16.mxu0 0
    %341 = vmatpush1.bf16.msra.mxu0 0
    %342 = vmatprep.subr.bf16.mxu0 0
    %343 = vmatpush1.bf16.msra.mxu0 0
    %344 = vmatprep.subr.bf16.mxu0 0
    %345 = vmatpush1.bf16.msra.mxu0 0
    %346 = vmatprep.subr.bf16.mxu0 0
    %347 = vmatpush1.bf16.msra.mxu0 0
    %348 = vmatprep.subr.bf16.mxu0 0
    %349 = vmatpush1.bf16.msra.mxu0 0
    %350 = vmatprep.mubr.bf16.mxu0 0
    %351 = vmatmul.mubr.bf16.gmra.mrb[0].mxu0 %v246
    %v352 = vpop.f32.mrb[0].mxu0
    %v353 = vadd.f32 %v268, %v352
    %v354 = vpop.f32.mrb[0].mxu0
    %v355 = vpop.f32.mrb[0].mxu0
    %v356 = vadd.f32 %v268, %v355
    %v357 = vpop.f32.mrb[0].mxu0
    %358 = vdwg.mxu0
    %v359 = vld [vmem:[#allocation5] sm:$0xff]
    %v360 = vld [vmem:[#allocation5 + $0x8] sm:$0xff]
    %v361 = vadd.f32 %v353, %v359
    %v362 = vadd.f32 %v356, %v360
    %363 = vst [vmem:[#allocation14] sm:$0xff] %v361
    %364 = vst [vmem:[#allocation14 + $0x8] sm:$0xff] %v362
    %v365 = vpack.c.bf16 %v362, %v361
    %v366 = vld [vmem:[#allocation10] sm:$0xf]
    %v367 = vld [vmem:[#allocation10 + $0x4] sm:$0xf]
    %v368 = vld [vmem:[#allocation10 + $0x8] sm:$0xf]
    %v369 = vld [vmem:[#allocation10 + $0xc] sm:$0xf]
    %v370 = vld [vmem:[#allocation10 + $0x10] sm:$0xf]
    %v371 = vld [vmem:[#allocation10 + $0x14] sm:$0xf]
    %v372 = vld [vmem:[#allocation10 + $0x18] sm:$0xf]
    %v373 = vld [vmem:[#allocation10 + $0x1c] sm:$0xf]
    %v374 = vld [vmem:[#allocation10 + $0x20] sm:$0xf]
    %v375 = vld [vmem:[#allocation10 + $0x24] sm:$0xf]
    %v376 = vld [vmem:[#allocation10 + $0x28] sm:$0xf]
    %v377 = vld [vmem:[#allocation10 + $0x2c] sm:$0xf]
    %v378 = vld [vmem:[#allocation10 + $0x30] sm:$0xf]
    %v379 = vld [vmem:[#allocation10 + $0x34] sm:$0xf]
    %v380 = vld [vmem:[#allocation10 + $0x38] sm:$0xf]
    %v381 = vld [vmem:[#allocation10 + $0x3c] sm:$0xf]
    %v382 = vld [vmem:[%s7] sm:$0x1]
    %v384 = vlaneseq
    %v385 = vshrl.u32 %v384, 7
    %v386 = vsub.s32 0, %v385
    %v387 = vrot.slane %v382, %v386
    %v405 = vunpack.c.l.b16 %v366
    %v406 = vunpack.c.l.b16 %v367
    %v407 = vunpack.c.l.b16 %v368
    %v408 = vunpack.c.l.b16 %v369
    %v409 = vunpack.c.l.b16 %v370
    %v410 = vunpack.c.l.b16 %v371
    %v411 = vunpack.c.l.b16 %v372
    %v412 = vunpack.c.l.b16 %v373
    %v413 = vunpack.c.l.b16 %v374
    %v414 = vunpack.c.l.b16 %v375
    %v415 = vunpack.c.l.b16 %v376
    %v416 = vunpack.c.l.b16 %v377
    %v417 = vunpack.c.l.b16 %v378
    %v418 = vunpack.c.l.b16 %v379
    %v419 = vunpack.c.l.b16 %v380
    %v420 = vunpack.c.l.b16 %v381
    %v421 = vpack.c.b16 %v406, %v405
    %v422 = vpack.c.b16 %v408, %v407
    %v423 = vpack.c.b16 %v410, %v409
    %v424 = vpack.c.b16 %v412, %v411
    %v425 = vpack.c.b16 %v414, %v413
    %v426 = vpack.c.b16 %v416, %v415
    %v427 = vpack.c.b16 %v418, %v417
    %v428 = vpack.c.b16 %v420, %v419
    %437 = vmatprep.subr.bf16.mxu0 0
    %438 = vmatpush1.bf16.msra.mxu0 %v421
    %439 = vmatprep.subr.bf16.mxu0 0
    %440 = vmatpush1.bf16.msra.mxu0 %v422
    %441 = vmatprep.subr.bf16.mxu0 0
    %442 = vmatpush1.bf16.msra.mxu0 %v423
    %443 = vmatprep.subr.bf16.mxu0 0
    %444 = vmatpush1.bf16.msra.mxu0 %v424
    %445 = vmatprep.subr.bf16.mxu0 0
    %446 = vmatpush1.bf16.msra.mxu0 %v425
    %447 = vmatprep.subr.bf16.mxu0 0
    %448 = vmatpush1.bf16.msra.mxu0 %v426
    %449 = vmatprep.subr.bf16.mxu0 0
    %450 = vmatpush1.bf16.msra.mxu0 %v427
    %451 = vmatprep.subr.bf16.mxu0 0
    %452 = vmatpush1.bf16.msra.mxu0 %v428
    %453 = vmatprep.subr.bf16.mxu0 0
    %454 = vmatpush1.bf16.msra.mxu0 0
    %455 = vmatprep.subr.bf16.mxu0 0
    %456 = vmatpush1.bf16.msra.mxu0 0
    %457 = vmatprep.subr.bf16.mxu0 0
    %458 = vmatpush1.bf16.msra.mxu0 0
    %459 = vmatprep.subr.bf16.mxu0 0
    %460 = vmatpush1.bf16.msra.mxu0 0
    %461 = vmatprep.subr.bf16.mxu0 0
    %462 = vmatpush1.bf16.msra.mxu0 0
    %463 = vmatprep.subr.bf16.mxu0 0
    %464 = vmatpush1.bf16.msra.mxu0 0
    %465 = vmatprep.subr.bf16.mxu0 0
    %466 = vmatpush1.bf16.msra.mxu0 0
    %467 = vmatprep.subr.bf16.mxu0 0
    %468 = vmatpush1.bf16.msra.mxu0 0
    %469 = vmatprep.mubr.bf16.mxu0 0
    %470 = vmatmul.mubr.bf16.gmra.mrb[0].mxu0 %v365
    %v471 = vpop.f32.mrb[0].mxu0
    %v472 = vadd.f32 %v387, %v471
    %v473 = vpop.f32.mrb[0].mxu0
    %v474 = vpop.f32.mrb[0].mxu0
    %v475 = vadd.f32 %v387, %v474
    %v476 = vpop.f32.mrb[0].mxu0
    %477 = vdwg.mxu0
    %v478 = vmul.f32 %v472, 0.2
    %v479 = vmul.f32 %v475, 0.2
    %v480 = vmax.f32 %v472, %v478
    %v481 = vmax.f32 %v475, %v479
    %v482 = vpack.c.bf16 %v481, %v480
    %v483 = vld [vmem:[#allocation11] sm:$0xf]
    %v484 = vld [vmem:[#allocation11 + $0x4] sm:$0xf]
    %v485 = vld [vmem:[#allocation11 + $0x8] sm:$0xf]
    %v486 = vld [vmem:[#allocation11 + $0xc] sm:$0xf]
    %v487 = vld [vmem:[#allocation11 + $0x10] sm:$0xf]
    %v488 = vld [vmem:[#allocation11 + $0x14] sm:$0xf]
    %v489 = vld [vmem:[#allocation11 + $0x18] sm:$0xf]
    %v490 = vld [vmem:[#allocation11 + $0x1c] sm:$0xf]
    %v491 = vld [vmem:[#allocation11 + $0x20] sm:$0xf]
    %v492 = vld [vmem:[#allocation11 + $0x24] sm:$0xf]
    %v493 = vld [vmem:[#allocation11 + $0x28] sm:$0xf]
    %v494 = vld [vmem:[#allocation11 + $0x2c] sm:$0xf]
    %v495 = vld [vmem:[#allocation11 + $0x30] sm:$0xf]
    %v496 = vld [vmem:[#allocation11 + $0x34] sm:$0xf]
    %v497 = vld [vmem:[#allocation11 + $0x38] sm:$0xf]
    %v498 = vld [vmem:[#allocation11 + $0x3c] sm:$0xf]
    %v499 = vld [vmem:[%s9] sm:$0x1]
    %v501 = vlaneseq
    %v502 = vshrl.u32 %v501, 7
    %v503 = vsub.s32 0, %v502
    %v504 = vrot.slane %v499, %v503
    %v522 = vunpack.c.l.b16 %v483
    %v523 = vunpack.c.l.b16 %v484
    %v524 = vunpack.c.l.b16 %v485
    %v525 = vunpack.c.l.b16 %v486
    %v526 = vunpack.c.l.b16 %v487
    %v527 = vunpack.c.l.b16 %v488
    %v528 = vunpack.c.l.b16 %v489
    %v529 = vunpack.c.l.b16 %v490
    %v530 = vunpack.c.l.b16 %v491
    %v531 = vunpack.c.l.b16 %v492
    %v532 = vunpack.c.l.b16 %v493
    %v533 = vunpack.c.l.b16 %v494
    %v534 = vunpack.c.l.b16 %v495
    %v535 = vunpack.c.l.b16 %v496
    %v536 = vunpack.c.l.b16 %v497
    %v537 = vunpack.c.l.b16 %v498
    %v538 = vpack.c.b16 %v523, %v522
    %v539 = vpack.c.b16 %v525, %v524
    %v540 = vpack.c.b16 %v527, %v526
    %v541 = vpack.c.b16 %v529, %v528
    %v542 = vpack.c.b16 %v531, %v530
    %v543 = vpack.c.b16 %v533, %v532
    %v544 = vpack.c.b16 %v535, %v534
    %v545 = vpack.c.b16 %v537, %v536
    %554 = vmatprep.subr.bf16.mxu0 0
    %555 = vmatpush1.bf16.msra.mxu0 %v538
    %556 = vmatprep.subr.bf16.mxu0 0
    %557 = vmatpush1.bf16.msra.mxu0 %v539
    %558 = vmatprep.subr.bf16.mxu0 0
    %559 = vmatpush1.bf16.msra.mxu0 %v540
    %560 = vmatprep.subr.bf16.mxu0 0
    %561 = vmatpush1.bf16.msra.mxu0 %v541
    %562 = vmatprep.subr.bf16.mxu0 0
    %563 = vmatpush1.bf16.msra.mxu0 %v542
    %564 = vmatprep.subr.bf16.mxu0 0
    %565 = vmatpush1.bf16.msra.mxu0 %v543
    %566 = vmatprep.subr.bf16.mxu0 0
    %567 = vmatpush1.bf16.msra.mxu0 %v544
    %568 = vmatprep.subr.bf16.mxu0 0
    %569 = vmatpush1.bf16.msra.mxu0 %v545
    %570 = vmatprep.subr.bf16.mxu0 0
    %571 = vmatpush1.bf16.msra.mxu0 0
    %572 = vmatprep.subr.bf16.mxu0 0
    %573 = vmatpush1.bf16.msra.mxu0 0
    %574 = vmatprep.subr.bf16.mxu0 0
    %575 = vmatpush1.bf16.msra.mxu0 0
    %576 = vmatprep.subr.bf16.mxu0 0
    %577 = vmatpush1.bf16.msra.mxu0 0
    %578 = vmatprep.subr.bf16.mxu0 0
    %579 = vmatpush1.bf16.msra.mxu0 0
    %580 = vmatprep.subr.bf16.mxu0 0
    %581 = vmatpush1.bf16.msra.mxu0 0
    %582 = vmatprep.subr.bf16.mxu0 0
    %583 = vmatpush1.bf16.msra.mxu0 0
    %584 = vmatprep.subr.bf16.mxu0 0
    %585 = vmatpush1.bf16.msra.mxu0 0
    %586 = vmatprep.mubr.bf16.mxu0 0
    %587 = vmatmul.mubr.bf16.gmra.mrb[0].mxu0 %v482
    %v588 = vpop.f32.mrb[0].mxu0
    %v589 = vadd.f32 %v504, %v588
    %v590 = vpop.f32.mrb[0].mxu0
    %v591 = vpop.f32.mrb[0].mxu0
    %v592 = vadd.f32 %v504, %v591
    %v593 = vpop.f32.mrb[0].mxu0
    %594 = vdwg.mxu0
    %v595 = vmax.f32 %v589, 0.0
    %v596 = vmax.f32 %v592, 0.0
    %597 = vst [vmem:[#allocation13] sm:$0xff] %v595
    %598 = vst [vmem:[#allocation13 + $0x8] sm:$0xff] %v596
    // Predicated region
    $region66: #{tpu_custom_call.1} parent=1 // pred_check
      _
    $region67: #{tpu_custom_call.1} parent=1 // pred_check_branch
      %600 = sbr.rel (0) target = $region69
    $region68: #{tpu_custom_call.1} parent=1 // pred_region
      %s602 = ssub.s32 256, 256
      %603 = vsyncadd [#allocation4], %s602
      %s604 = sshll.u32 [#allocation13], 4
      %s605 = int_to_ptr.vmem [resolvable:$true] %s604
      %610 = dma.vmem_to_hbm [thread:$0]  %s605, 256, %s10, [#allocation4], 128, 128, 8
    $region69: #{tpu_custom_call.1} parent=1 // pred_fallthru
      _
    // Predicated region
    $region70: #{tpu_custom_call.1} parent=1 // pred_check
      _
    $region71: #{tpu_custom_call.1} parent=1 // pred_check_branch
      %612 = sbr.rel (0) target = $region73
    $region72: #{tpu_custom_call.1} parent=1 // pred_region
      %s614 = ssub.s32 256, 256
      %615 = vsyncadd [#allocation15], %s614
      %s616 = sshll.u32 [#allocation14], 4
      %s617 = int_to_ptr.vmem [resolvable:$true] %s616
      %622 = dma.vmem_to_hbm [thread:$0]  %s617, 256, %s11, [#allocation15], 128, 128, 8
    $region73: #{tpu_custom_call.1} parent=1 // pred_fallthru
      _
    // Predicated region
    $region74: #{tpu_custom_call.1} parent=1 // pred_check
      _
    $region75: #{tpu_custom_call.1} parent=1 // pred_check_branch
      %624 = sbr.rel (0) target = $region77
    $region76: #{tpu_custom_call.1} parent=1 // pred_region
      %625 = dma.done [#allocation4], 256
    $region77: #{tpu_custom_call.1} parent=1 // pred_fallthru
      _
    // Predicated region
    $region78: #{tpu_custom_call.1} parent=1 // pred_check
      _
    $region79: #{tpu_custom_call.1} parent=1 // pred_check_branch
      %627 = sbr.rel (0) target = $region81
    $region80: #{tpu_custom_call.1} parent=1 // pred_region
      %628 = dma.done [#allocation15], 256
    $region81: #{tpu_custom_call.1} parent=1 // pred_fallthru
      _
    %629 = vsyncpa [#allocation3], 1
    %630 = vsyncpa [#allocation6], 1
    %631 = vsyncpa [#allocation9], 1
    %632 = vsyncpa [#allocation12], 1
    %633 = vsyncpa [#allocation4], 1
    %634 = vsyncpa [#allocation15], 1

</llo_original>
